<compile_context>
chip_gen: v5e
topology: v5e:2x2
jax: 0.10.0
libtpu: 0.0.40
codegen_flags: <defaults>
</compile_context>

<pallas_src>
import math

import jax
import jax.numpy as jnp
from jax.experimental import pallas as pl
from jax.experimental.pallas import tpu as pltpu

# MXU operand dtype for the HOISTED input projections only (accumulation f32).
# The recurrent h @ W_hh path and all gate/state math stay f32.
MM_DTYPE = jnp.bfloat16
SUBLANE = 8


def make_lstm_block_kernel(T, BP, H, num_layers, num_classes):
    """Builds the fused kernel closure for fixed (T, padded-batch BP, H, L, C)."""
    G = 4 * H          # per-direction gate width
    TB = T * BP

    def gate_act(gates):
        # i/f/o -> sigmoid, g -> tanh.  While 4H fits one 128-lane vreg the
        # full-width double EUP pass is free; beyond that, restrict each
        # transcendental to the lane range that needs it (single EUP is on the
        # serial per-step critical path).
        if G <= 128:
            s = jax.nn.sigmoid(gates)
            u = jnp.tanh(gates)
            return s[:, 0:H], s[:, H:2 * H], u[:, 2 * H:3 * H], s[:, 3 * H:4 * H]
        i_g = jax.nn.sigmoid(gates[:, 0:H])
        f_g = jax.nn.sigmoid(gates[:, H:2 * H])
        g_g = jnp.tanh(gates[:, 2 * H:3 * H])
        o_g = jax.nn.sigmoid(gates[:, 3 * H:4 * H])
        return i_g, f_g, g_g, o_g

    def lstm_step(gates, c):
        i_g, f_g, g_g, o_g = gate_act(gates)
        c_new = f_g * c + i_g * g_g
        h_new = o_g * jnp.tanh(c_new)
        return h_new, c_new

    def kernel(*refs):
        # refs = (x, [wih_cat, b_cat, whh_blockdiag] * L, fc_w, fc_b, out, seq, gx)
        x_ref = refs[0]
        layer_p = refs[1:1 + 3 * num_layers]
        fc_w_ref = refs[1 + 3 * num_layers]            # [2H, C] f32
        fc_b_ref = refs[2 + 3 * num_layers]            # [1, C]  f32
        out_ref = refs[3 + 3 * num_layers]             # [BP, C] f32
        seq_ref, gx_ref = refs[4 + 3 * num_layers:]    # [TB,2H], [TB,8H] f32

        zeros = jnp.zeros((BP, H), dtype=jnp.float32)
        h_f = h_r = None

        for layer in range(num_layers):
            wih_ref = layer_p[3 * layer]               # [D_in, 8H] bf16
            b_ref = layer_p[3 * layer + 1]             # [1, 8H]    f32
            whh_ref = layer_p[3 * layer + 2]           # [2H, 8H]   f32 block-diag
            is_last = layer == num_layers - 1

            # ---- hoisted input projection: ONE bf16 matmul per layer ----
            if layer == 0:
                x_in = x_ref[...]                                   # [TB, D] bf16
            else:
                x_in = seq_ref[...].astype(MM_DTYPE)                # [TB, 2H]

            if not is_last:
                gx_ref[...] = jnp.dot(
                    x_in, wih_ref[...],
                    preferred_element_type=jnp.float32) + b_ref[...]

                # ---- interleaved + fused bidirectional recurrence ----
                h_f = h_r = zeros
                c_f = c_r = zeros
                for s in range(T):                      # fully unrolled (static)
                    tf, tr = s, T - 1 - s
                    gates_f = gx_ref[pl.ds(tf * BP, BP), 0:G]
                    gates_r = gx_ref[pl.ds(tr * BP, BP), G:2 * G]
                    if s > 0:                           # step 0: h == 0, skip dot
                        h_cat = jnp.concatenate([h_f, h_r], axis=1)   # [BP, 2H]
                        rec = jnp.dot(h_cat, whh_ref[...],
                                      preferred_element_type=jnp.float32)
                        gates_f = gates_f + rec[:, 0:G]
                        gates_r = gates_r + rec[:, G:2 * G]
                    h_f, c_f = lstm_step(gates_f, c_f)
                    h_r, c_r = lstm_step(gates_r, c_r)
                    # fwd -> lanes 0:H, rev -> lanes H:2H of the next layer's input
                    seq_ref[pl.ds(tf * BP, BP), 0:H] = h_f
                    seq_ref[pl.ds(tr * BP, BP), H:2 * H] = h_r
            else:
                # Only out[:, -1, :] feeds the classifier:
                #   fwd: full recurrence; rev: exactly ONE step at position T-1
                #   with h0=c0=0 (no recurrent matmul, one-timestep projection).
                gx_ref[:, 0:G] = jnp.dot(
                    x_in, wih_ref[:, 0:G],
                    preferred_element_type=jnp.float32) + b_ref[:, 0:G]

                x_last = x_in[(T - 1) * BP:T * BP, :]
                gates_r = jnp.dot(
                    x_last, wih_ref[:, G:2 * G],
                    preferred_element_type=jnp.float32) + b_ref[:, G:2 * G]
                h_r, _ = lstm_step(gates_r, zeros)

                h_f = zeros
                c_f = zeros
                for t in range(T):
                    gates_f = gx_ref[pl.ds(t * BP, BP), 0:G]
                    if t > 0:
                        gates_f = gates_f + jnp.dot(
                            h_f, whh_ref[0:H, 0:G],
                            preferred_element_type=jnp.float32)
                    h_f, c_f = lstm_step(gates_f, c_f)

        # ---- fused final Linear on out[:, -1, :] = [h_f | h_r] ----
        h_cat = jnp.concatenate([h_f, h_r], axis=1)                  # [BP, 2H]
        out_ref[...] = jnp.dot(h_cat, fc_w_ref[...],
                               preferred_element_type=jnp.float32) + fc_b_ref[...]

    return kernel


def prepare_params(params, num_layers):
    """One-time weight re-layout (outside the per-call forward).

    Per layer: W_ih of both directions concatenated along the 4H output axis
    ([D_in, 8H], bf16), fused biases [1, 8H] (f32), and a block-diagonal
    W_hh [2H, 8H] (f32) with fwd in [0:H, 0:4H] and rev in [H:2H, 4H:8H].
    """
    H = params["lstm"][0]["fwd"]["w_hh"].shape[1]
    G = 4 * H
    layers = []
    for layer in range(num_layers):
        f = params["lstm"][layer]["fwd"]
        r = params["lstm"][layer]["rev"]
        wih = jnp.concatenate(
            [jnp.transpose(f["w_ih"]), jnp.transpose(r["w_ih"])],
            axis=1).astype(MM_DTYPE)                                  # [D_in, 8H]
        b = jnp.concatenate(
            [f["b_ih"] + f["b_hh"], r["b_ih"] + r["b_hh"]]
        ).reshape(1, 2 * G).astype(jnp.float32)                       # [1, 8H]
        whh_bd = jnp.zeros((2 * H, 2 * G), jnp.float32)
        whh_bd = whh_bd.at[0:H, 0:G].set(jnp.transpose(f["w_hh"]))
        whh_bd = whh_bd.at[H:2 * H, G:2 * G].set(jnp.transpose(r["w_hh"]))
        layers.append((wih, b, whh_bd))
    return {
        "layers": layers,
        "fc_w": jnp.transpose(params["fc_w"]).astype(jnp.float32),   # [2H, C]
        "fc_b": params["fc_b"].reshape(1, -1).astype(jnp.float32),   # [1, C]
    }


def lstm_block_forward(x, prepped):
    """x: [B, T, input_size] -> [B, num_classes] (matches LSTMBlock.forward)."""
    B, T, D = x.shape
    num_layers = len(prepped["layers"])
    fc_w = prepped["fc_w"]
    H = fc_w.shape[0] // 2
    C = fc_w.shape[1]
    BP = ((B + SUBLANE - 1) // SUBLANE) * SUBLANE       # sublane-aligned batch

    # Time-major, batch zero-padded to BP rows, flattened to [T*BP, D], bf16 so
    # every per-timestep block sits at a multiple-of-8 sublane offset.
    xt = jnp.transpose(x, (1, 0, 2))                    # [T, B, D]
    if BP != B:
        xt = jnp.pad(xt, ((0, 0), (0, BP - B), (0, 0)))
    x_flat = xt.reshape(T * BP, D).astype(MM_DTYPE)

    flat_inputs = [x_flat]
    for wih, b, whh in prepped["layers"]:
        flat_inputs += [wih, b, whh]
    flat_inputs += [fc_w, prepped["fc_b"]]

    kernel = make_lstm_block_kernel(T, BP, H, num_layers, C)
    vmem = pl.BlockSpec(memory_space=pltpu.MemorySpace.VMEM)
    out = pl.pallas_call(
        kernel,
        out_shape=jax.ShapeDtypeStruct((BP, C), jnp.float32),
        in_specs=[vmem] * len(flat_inputs),
        out_specs=vmem,
        scratch_shapes=[
            pltpu.VMEM((T * BP, 2 * H), jnp.float32),   # inter-layer [h_f | h_r] sequence
            pltpu.VMEM((T * BP, 8 * H), jnp.float32),   # hoisted x@W_ih + b (both dirs)
        ],
    )(*flat_inputs)
    return out[:B]


def init_params(key, input_size, hidden_size, num_layers, num_classes):
    """Deterministic init matching PyTorch parameter shapes (uniform +-1/sqrt(H))."""
    H = hidden_size
    k_lstm = 1.0 / math.sqrt(H)
    params = {"lstm": []}
    for layer in range(num_layers):
        d_in = input_size if layer == 0 else 2 * H
        layer_p = {}
        for direction in ("fwd", "rev"):
            key, k1, k2, k3, k4 = jax.random.split(key, 5)
            layer_p[direction] = {
                "w_ih": jax.random.uniform(k1, (4 * H, d_in), jnp.float32,
                                           -k_lstm, k_lstm),
                "w_hh": jax.random.uniform(k2, (4 * H, H), jnp.float32,
                                           -k_lstm, k_lstm),
                "b_ih": jax.random.uniform(k3, (4 * H,), jnp.float32,
                                           -k_lstm, k_lstm),
                "b_hh": jax.random.uniform(k4, (4 * H,), jnp.float32,
                                           -k_lstm, k_lstm),
            }
        params["lstm"].append(layer_p)
    k_fc = 1.0 / math.sqrt(2 * H)
    key, k1, k2 = jax.random.split(key, 3)
    params["fc_w"] = jax.random.uniform(k1, (num_classes, 2 * H), jnp.float32,
                                        -k_fc, k_fc)
    params["fc_b"] = jax.random.uniform(k2, (num_classes,), jnp.float32,
                                        -k_fc, k_fc)
    return params


def lstm_block_reference(x, params, num_layers):
    """Pure-JAX f32 reference of the PyTorch LSTMBlock forward pass."""
    B, T, _ = x.shape
    H = params["lstm"][0]["fwd"]["w_hh"].shape[1]

    def cell(x_t, h, c, p):
        gates = (x_t @ p["w_ih"].T + h @ p["w_hh"].T + p["b_ih"] + p["b_hh"])
        i = jax.nn.sigmoid(gates[:, 0:H])
        f = jax.nn.sigmoid(gates[:, H:2 * H])
        g = jnp.tanh(gates[:, 2 * H:3 * H])
        o = jax.nn.sigmoid(gates[:, 3 * H:4 * H])
        c = f * c + i * g
        h = o * jnp.tanh(c)
        return h, c

    layer_in = x
    for layer in range(num_layers):
        outs = []
        for d, order in (("fwd", range(T)), ("rev", range(T - 1, -1, -1))):
            p = params["lstm"][layer][d]
            h = jnp.zeros((B, H), jnp.float32)
            c = jnp.zeros((B, H), jnp.float32)
            seq = [None] * T
            for t in order:
                h, c = cell(layer_in[:, t, :], h, c, p)
                seq[t] = h
            outs.append(jnp.stack(seq, axis=1))
        layer_in = jnp.concatenate(outs, axis=-1)
    return layer_in[:, -1, :] @ params["fc_w"].T + params["fc_b"]


if __name__ == "__main__":
    batch_size = 2
    frames_per_video = 8
    input_size = 16
    hidden_size = 32
    num_layers = 2
    num_classes = 4

    key = jax.random.PRNGKey(0)
    kx, kp = jax.random.split(key)
    x = jax.random.normal(kx, (batch_size, frames_per_video, input_size),
                          dtype=jnp.float32)
    params = init_params(kp, input_size, hidden_size, num_layers, num_classes)

    prepped = prepare_params(params, num_layers)    # one-time weight re-layout
    fwd = jax.jit(lstm_block_forward)
    out = jax.block_until_ready(fwd(x, prepped))

    assert out.shape == (batch_size, num_classes)
    assert bool(jnp.all(jnp.isfinite(out)))

    ref = lstm_block_reference(x, params, num_layers)
    max_err = float(jnp.max(jnp.abs(out - ref)))
    assert max_err < 5e-2, f"max abs err vs f32 reference: {max_err}"
    print("KERNEL_OK")
</pallas_src>

<mosaic_0001>
module attributes {stable_mosaic.version = 11 : i64} {
  func.func @kernel(%arg0: memref<64x16xbf16, #tpu.memory_space<vmem>>, %arg1: memref<16x256xbf16, #tpu.memory_space<vmem>>, %arg2: memref<1x256xf32, #tpu.memory_space<vmem>>, %arg3: memref<64x256xf32, #tpu.memory_space<vmem>>, %arg4: memref<64x256xbf16, #tpu.memory_space<vmem>>, %arg5: memref<1x256xf32, #tpu.memory_space<vmem>>, %arg6: memref<64x256xf32, #tpu.memory_space<vmem>>, %arg7: memref<64x4xf32, #tpu.memory_space<vmem>>, %arg8: memref<1x4xf32, #tpu.memory_space<vmem>>, %arg9: memref<8x4xf32, #tpu.memory_space<vmem>>, %arg10: memref<64x64xf32, #tpu.memory_space<vmem>>, %arg11: memref<64x256xf32, #tpu.memory_space<vmem>>) attributes {dimension_semantics = [], scalar_prefetch = 0 : i64, scratch_operands = 2 : i64, tpu.core_type = #tpu.core_type<tc>} {
    %cst = arith.constant 0.000000e+00 : f32
    %0 = vector.broadcast %cst : f32 to vector<8x32xf32>
    %c0 = arith.constant 0 : index
    %c0_0 = arith.constant 0 : index
    %1 = vector.load %arg0[%c0, %c0_0] : memref<64x16xbf16, #tpu.memory_space<vmem>>, vector<64x16xbf16>
    %c0_1 = arith.constant 0 : index
    %c0_2 = arith.constant 0 : index
    %2 = vector.load %arg1[%c0_1, %c0_2] : memref<16x256xbf16, #tpu.memory_space<vmem>>, vector<16x256xbf16>
    %cst_3 = arith.constant dense<0.000000e+00> : vector<64x256xf32>
    %3 = tpu.matmul %1, %2, %cst_3 {dimension_numbers = #tpu.dot_dimension_numbers<[1], [0], [0], [1], [0, 0, 1, 1], [], []>} : vector<64x16xbf16>, vector<16x256xbf16>, vector<64x256xf32> -> vector<64x256xf32>
    %c0_4 = arith.constant 0 : index
    %c0_5 = arith.constant 0 : index
    %4 = vector.load %arg2[%c0_4, %c0_5] : memref<1x256xf32, #tpu.memory_space<vmem>>, vector<1x256xf32>
    %5 = vector.broadcast %4 : vector<1x256xf32> to vector<64x256xf32>
    %6 = arith.addf %3, %5 : vector<64x256xf32>
    %c0_6 = arith.constant 0 : index
    %c0_7 = arith.constant 0 : index
    %7 = vector.load %arg11[%c0_6, %c0_7] : memref<64x256xf32, #tpu.memory_space<vmem>>, vector<64x256xf32>
    tpu.vector_store %arg11[%c0_6, %c0_7], %6 {strides = array<i32>} : memref<64x256xf32, #tpu.memory_space<vmem>>, vector<64x256xf32>,
    %c0_8 = arith.constant 0 : index
    %c0_9 = arith.constant 0 : index
    %8 = vector.load %arg11[%c0_8, %c0_9] : memref<64x256xf32, #tpu.memory_space<vmem>>, vector<8x128xf32>
    %c56 = arith.constant 56 : index
    %c128 = arith.constant 128 : index
    %9 = vector.load %arg11[%c56, %c128] : memref<64x256xf32, #tpu.memory_space<vmem>>, vector<8x128xf32>
    %10 = arith.negf %8 : vector<8x128xf32>
    %11 = math.exp %10 : vector<8x128xf32>
    %cst_10 = arith.constant 1.000000e+00 : f32
    %12 = vector.broadcast %cst_10 : f32 to vector<8x128xf32>
    %13 = arith.addf %12, %11 : vector<8x128xf32>
    %14 = arith.divf %12, %13 : vector<8x128xf32>
    %15 = math.tanh %8 : vector<8x128xf32>
    %16 = vector.extract_strided_slice %14 {offsets = [0, 0], sizes = [8, 32], strides = [1, 1]} : vector<8x128xf32> to vector<8x32xf32>
    %17 = vector.extract_strided_slice %14 {offsets = [0, 32], sizes = [8, 32], strides = [1, 1]} : vector<8x128xf32> to vector<8x32xf32>
    %18 = vector.extract_strided_slice %15 {offsets = [0, 64], sizes = [8, 32], strides = [1, 1]} : vector<8x128xf32> to vector<8x32xf32>
    %19 = vector.extract_strided_slice %14 {offsets = [0, 96], sizes = [8, 32], strides = [1, 1]} : vector<8x128xf32> to vector<8x32xf32>
    %20 = arith.mulf %17, %0 : vector<8x32xf32>
    %21 = arith.mulf %16, %18 : vector<8x32xf32>
    %22 = arith.addf %20, %21 : vector<8x32xf32>
    %23 = math.tanh %22 : vector<8x32xf32>
    %24 = arith.mulf %19, %23 : vector<8x32xf32>
    %25 = arith.negf %9 : vector<8x128xf32>
    %26 = math.exp %25 : vector<8x128xf32>
    %cst_11 = arith.constant 1.000000e+00 : f32
    %27 = vector.broadcast %cst_11 : f32 to vector<8x128xf32>
    %28 = arith.addf %27, %26 : vector<8x128xf32>
    %29 = arith.divf %27, %28 : vector<8x128xf32>
    %30 = math.tanh %9 : vector<8x128xf32>
    %31 = vector.extract_strided_slice %29 {offsets = [0, 0], sizes = [8, 32], strides = [1, 1]} : vector<8x128xf32> to vector<8x32xf32>
    %32 = vector.extract_strided_slice %29 {offsets = [0, 32], sizes = [8, 32], strides = [1, 1]} : vector<8x128xf32> to vector<8x32xf32>
    %33 = vector.extract_strided_slice %30 {offsets = [0, 64], sizes = [8, 32], strides = [1, 1]} : vector<8x128xf32> to vector<8x32xf32>
    %34 = vector.extract_strided_slice %29 {offsets = [0, 96], sizes = [8, 32], strides = [1, 1]} : vector<8x128xf32> to vector<8x32xf32>
    %35 = arith.mulf %32, %0 : vector<8x32xf32>
    %36 = arith.mulf %31, %33 : vector<8x32xf32>
    %37 = arith.addf %35, %36 : vector<8x32xf32>
    %38 = math.tanh %37 : vector<8x32xf32>
    %39 = arith.mulf %34, %38 : vector<8x32xf32>
    %c0_12 = arith.constant 0 : index
    %c0_13 = arith.constant 0 : index
    %40 = vector.load %arg10[%c0_12, %c0_13] : memref<64x64xf32, #tpu.memory_space<vmem>>, vector<8x32xf32>
    tpu.vector_store %arg10[%c0_12, %c0_13], %24 {strides = array<i32>} : memref<64x64xf32, #tpu.memory_space<vmem>>, vector<8x32xf32>,
    %c56_14 = arith.constant 56 : index
    %c32 = arith.constant 32 : index
    %41 = vector.load %arg10[%c56_14, %c32] : memref<64x64xf32, #tpu.memory_space<vmem>>, vector<8x32xf32>
    tpu.vector_store %arg10[%c56_14, %c32], %39 {strides = array<i32>} : memref<64x64xf32, #tpu.memory_space<vmem>>, vector<8x32xf32>,
    %c8 = arith.constant 8 : index
    %c0_15 = arith.constant 0 : index
    %42 = vector.load %arg11[%c8, %c0_15] : memref<64x256xf32, #tpu.memory_space<vmem>>, vector<8x128xf32>
    %c48 = arith.constant 48 : index
    %c128_16 = arith.constant 128 : index
    %43 = vector.load %arg11[%c48, %c128_16] : memref<64x256xf32, #tpu.memory_space<vmem>>, vector<8x128xf32>
    %44 = tpu.concatenate %24, %39 in 1 : vector<8x32xf32>, vector<8x32xf32> -> vector<8x64xf32>
    %c0_17 = arith.constant 0 : index
    %c0_18 = arith.constant 0 : index
    %45 = vector.load %arg3[%c0_17, %c0_18] : memref<64x256xf32, #tpu.memory_space<vmem>>, vector<64x256xf32>
    %cst_19 = arith.constant dense<0.000000e+00> : vector<8x256xf32>
    %46 = tpu.matmul %44, %45, %cst_19 {dimension_numbers = #tpu.dot_dimension_numbers<[1], [0], [0], [1], [0, 0, 1, 1], [], []>} : vector<8x64xf32>, vector<64x256xf32>, vector<8x256xf32> -> vector<8x256xf32>
    %47 = vector.extract_strided_slice %46 {offsets = [0, 0], sizes = [8, 128], strides = [1, 1]} : vector<8x256xf32> to vector<8x128xf32>
    %48 = arith.addf %42, %47 : vector<8x128xf32>
    %49 = vector.extract_strided_slice %46 {offsets = [0, 128], sizes = [8, 128], strides = [1, 1]} : vector<8x256xf32> to vector<8x128xf32>
    %50 = arith.addf %43, %49 : vector<8x128xf32>
    %51 = arith.negf %48 : vector<8x128xf32>
    %52 = math.exp %51 : vector<8x128xf32>
    %cst_20 = arith.constant 1.000000e+00 : f32
    %53 = vector.broadcast %cst_20 : f32 to vector<8x128xf32>
    %54 = arith.addf %53, %52 : vector<8x128xf32>
    %55 = arith.divf %53, %54 : vector<8x128xf32>
    %56 = math.tanh %48 : vector<8x128xf32>
    %57 = vector.extract_strided_slice %55 {offsets = [0, 0], sizes = [8, 32], strides = [1, 1]} : vector<8x128xf32> to vector<8x32xf32>
    %58 = vector.extract_strided_slice %55 {offsets = [0, 32], sizes = [8, 32], strides = [1, 1]} : vector<8x128xf32> to vector<8x32xf32>
    %59 = vector.extract_strided_slice %56 {offsets = [0, 64], sizes = [8, 32], strides = [1, 1]} : vector<8x128xf32> to vector<8x32xf32>
    %60 = vector.extract_strided_slice %55 {offsets = [0, 96], sizes = [8, 32], strides = [1, 1]} : vector<8x128xf32> to vector<8x32xf32>
    %61 = arith.mulf %58, %22 : vector<8x32xf32>
    %62 = arith.mulf %57, %59 : vector<8x32xf32>
    %63 = arith.addf %61, %62 : vector<8x32xf32>
    %64 = math.tanh %63 : vector<8x32xf32>
    %65 = arith.mulf %60, %64 : vector<8x32xf32>
    %66 = arith.negf %50 : vector<8x128xf32>
    %67 = math.exp %66 : vector<8x128xf32>
    %cst_21 = arith.constant 1.000000e+00 : f32
    %68 = vector.broadcast %cst_21 : f32 to vector<8x128xf32>
    %69 = arith.addf %68, %67 : vector<8x128xf32>
    %70 = arith.divf %68, %69 : vector<8x128xf32>
    %71 = math.tanh %50 : vector<8x128xf32>
    %72 = vector.extract_strided_slice %70 {offsets = [0, 0], sizes = [8, 32], strides = [1, 1]} : vector<8x128xf32> to vector<8x32xf32>
    %73 = vector.extract_strided_slice %70 {offsets = [0, 32], sizes = [8, 32], strides = [1, 1]} : vector<8x128xf32> to vector<8x32xf32>
    %74 = vector.extract_strided_slice %71 {offsets = [0, 64], sizes = [8, 32], strides = [1, 1]} : vector<8x128xf32> to vector<8x32xf32>
    %75 = vector.extract_strided_slice %70 {offsets = [0, 96], sizes = [8, 32], strides = [1, 1]} : vector<8x128xf32> to vector<8x32xf32>
    %76 = arith.mulf %73, %37 : vector<8x32xf32>
    %77 = arith.mulf %72, %74 : vector<8x32xf32>
    %78 = arith.addf %76, %77 : vector<8x32xf32>
    %79 = math.tanh %78 : vector<8x32xf32>
    %80 = arith.mulf %75, %79 : vector<8x32xf32>
    %c8_22 = arith.constant 8 : index
    %c0_23 = arith.constant 0 : index
    %81 = vector.load %arg10[%c8_22, %c0_23] : memref<64x64xf32, #tpu.memory_space<vmem>>, vector<8x32xf32>
    tpu.vector_store %arg10[%c8_22, %c0_23], %65 {strides = array<i32>} : memref<64x64xf32, #tpu.memory_space<vmem>>, vector<8x32xf32>,
    %c48_24 = arith.constant 48 : index
    %c32_25 = arith.constant 32 : index
    %82 = vector.load %arg10[%c48_24, %c32_25] : memref<64x64xf32, #tpu.memory_space<vmem>>, vector<8x32xf32>
    tpu.vector_store %arg10[%c48_24, %c32_25], %80 {strides = array<i32>} : memref<64x64xf32, #tpu.memory_space<vmem>>, vector<8x32xf32>,
    %c16 = arith.constant 16 : index
    %c0_26 = arith.constant 0 : index
    %83 = vector.load %arg11[%c16, %c0_26] : memref<64x256xf32, #tpu.memory_space<vmem>>, vector<8x128xf32>
    %c40 = arith.constant 40 : index
    %c128_27 = arith.constant 128 : index
    %84 = vector.load %arg11[%c40, %c128_27] : memref<64x256xf32, #tpu.memory_space<vmem>>, vector<8x128xf32>
    %85 = tpu.concatenate %65, %80 in 1 : vector<8x32xf32>, vector<8x32xf32> -> vector<8x64xf32>
    %c0_28 = arith.constant 0 : index
    %c0_29 = arith.constant 0 : index
    %86 = vector.load %arg3[%c0_28, %c0_29] : memref<64x256xf32, #tpu.memory_space<vmem>>, vector<64x256xf32>
    %cst_30 = arith.constant dense<0.000000e+00> : vector<8x256xf32>
    %87 = tpu.matmul %85, %86, %cst_30 {dimension_numbers = #tpu.dot_dimension_numbers<[1], [0], [0], [1], [0, 0, 1, 1], [], []>} : vector<8x64xf32>, vector<64x256xf32>, vector<8x256xf32> -> vector<8x256xf32>
    %88 = vector.extract_strided_slice %87 {offsets = [0, 0], sizes = [8, 128], strides = [1, 1]} : vector<8x256xf32> to vector<8x128xf32>
    %89 = arith.addf %83, %88 : vector<8x128xf32>
    %90 = vector.extract_strided_slice %87 {offsets = [0, 128], sizes = [8, 128], strides = [1, 1]} : vector<8x256xf32> to vector<8x128xf32>
    %91 = arith.addf %84, %90 : vector<8x128xf32>
    %92 = arith.negf %89 : vector<8x128xf32>
    %93 = math.exp %92 : vector<8x128xf32>
    %cst_31 = arith.constant 1.000000e+00 : f32
    %94 = vector.broadcast %cst_31 : f32 to vector<8x128xf32>
    %95 = arith.addf %94, %93 : vector<8x128xf32>
    %96 = arith.divf %94, %95 : vector<8x128xf32>
    %97 = math.tanh %89 : vector<8x128xf32>
    %98 = vector.extract_strided_slice %96 {offsets = [0, 0], sizes = [8, 32], strides = [1, 1]} : vector<8x128xf32> to vector<8x32xf32>
    %99 = vector.extract_strided_slice %96 {offsets = [0, 32], sizes = [8, 32], strides = [1, 1]} : vector<8x128xf32> to vector<8x32xf32>
    %100 = vector.extract_strided_slice %97 {offsets = [0, 64], sizes = [8, 32], strides = [1, 1]} : vector<8x128xf32> to vector<8x32xf32>
    %101 = vector.extract_strided_slice %96 {offsets = [0, 96], sizes = [8, 32], strides = [1, 1]} : vector<8x128xf32> to vector<8x32xf32>
    %102 = arith.mulf %99, %63 : vector<8x32xf32>
    %103 = arith.mulf %98, %100 : vector<8x32xf32>
    %104 = arith.addf %102, %103 : vector<8x32xf32>
    %105 = math.tanh %104 : vector<8x32xf32>
    %106 = arith.mulf %101, %105 : vector<8x32xf32>
    %107 = arith.negf %91 : vector<8x128xf32>
    %108 = math.exp %107 : vector<8x128xf32>
    %cst_32 = arith.constant 1.000000e+00 : f32
    %109 = vector.broadcast %cst_32 : f32 to vector<8x128xf32>
    %110 = arith.addf %109, %108 : vector<8x128xf32>
    %111 = arith.divf %109, %110 : vector<8x128xf32>
    %112 = math.tanh %91 : vector<8x128xf32>
    %113 = vector.extract_strided_slice %111 {offsets = [0, 0], sizes = [8, 32], strides = [1, 1]} : vector<8x128xf32> to vector<8x32xf32>
    %114 = vector.extract_strided_slice %111 {offsets = [0, 32], sizes = [8, 32], strides = [1, 1]} : vector<8x128xf32> to vector<8x32xf32>
    %115 = vector.extract_strided_slice %112 {offsets = [0, 64], sizes = [8, 32], strides = [1, 1]} : vector<8x128xf32> to vector<8x32xf32>
    %116 = vector.extract_strided_slice %111 {offsets = [0, 96], sizes = [8, 32], strides = [1, 1]} : vector<8x128xf32> to vector<8x32xf32>
    %117 = arith.mulf %114, %78 : vector<8x32xf32>
    %118 = arith.mulf %113, %115 : vector<8x32xf32>
    %119 = arith.addf %117, %118 : vector<8x32xf32>
    %120 = math.tanh %119 : vector<8x32xf32>
    %121 = arith.mulf %116, %120 : vector<8x32xf32>
    %c16_33 = arith.constant 16 : index
    %c0_34 = arith.constant 0 : index
    %122 = vector.load %arg10[%c16_33, %c0_34] : memref<64x64xf32, #tpu.memory_space<vmem>>, vector<8x32xf32>
    tpu.vector_store %arg10[%c16_33, %c0_34], %106 {strides = array<i32>} : memref<64x64xf32, #tpu.memory_space<vmem>>, vector<8x32xf32>,
    %c40_35 = arith.constant 40 : index
    %c32_36 = arith.constant 32 : index
    %123 = vector.load %arg10[%c40_35, %c32_36] : memref<64x64xf32, #tpu.memory_space<vmem>>, vector<8x32xf32>
    tpu.vector_store %arg10[%c40_35, %c32_36], %121 {strides = array<i32>} : memref<64x64xf32, #tpu.memory_space<vmem>>, vector<8x32xf32>,
    %c24 = arith.constant 24 : index
    %c0_37 = arith.constant 0 : index
    %124 = vector.load %arg11[%c24, %c0_37] : memref<64x256xf32, #tpu.memory_space<vmem>>, vector<8x128xf32>
    %c32_38 = arith.constant 32 : index
    %c128_39 = arith.constant 128 : index
    %125 = vector.load %arg11[%c32_38, %c128_39] : memref<64x256xf32, #tpu.memory_space<vmem>>, vector<8x128xf32>
    %126 = tpu.concatenate %106, %121 in 1 : vector<8x32xf32>, vector<8x32xf32> -> vector<8x64xf32>
    %c0_40 = arith.constant 0 : index
    %c0_41 = arith.constant 0 : index
    %127 = vector.load %arg3[%c0_40, %c0_41] : memref<64x256xf32, #tpu.memory_space<vmem>>, vector<64x256xf32>
    %cst_42 = arith.constant dense<0.000000e+00> : vector<8x256xf32>
    %128 = tpu.matmul %126, %127, %cst_42 {dimension_numbers = #tpu.dot_dimension_numbers<[1], [0], [0], [1], [0, 0, 1, 1], [], []>} : vector<8x64xf32>, vector<64x256xf32>, vector<8x256xf32> -> vector<8x256xf32>
    %129 = vector.extract_strided_slice %128 {offsets = [0, 0], sizes = [8, 128], strides = [1, 1]} : vector<8x256xf32> to vector<8x128xf32>
    %130 = arith.addf %124, %129 : vector<8x128xf32>
    %131 = vector.extract_strided_slice %128 {offsets = [0, 128], sizes = [8, 128], strides = [1, 1]} : vector<8x256xf32> to vector<8x128xf32>
    %132 = arith.addf %125, %131 : vector<8x128xf32>
    %133 = arith.negf %130 : vector<8x128xf32>
    %134 = math.exp %133 : vector<8x128xf32>
    %cst_43 = arith.constant 1.000000e+00 : f32
    %135 = vector.broadcast %cst_43 : f32 to vector<8x128xf32>
    %136 = arith.addf %135, %134 : vector<8x128xf32>
    %137 = arith.divf %135, %136 : vector<8x128xf32>
    %138 = math.tanh %130 : vector<8x128xf32>
    %139 = vector.extract_strided_slice %137 {offsets = [0, 0], sizes = [8, 32], strides = [1, 1]} : vector<8x128xf32> to vector<8x32xf32>
    %140 = vector.extract_strided_slice %137 {offsets = [0, 32], sizes = [8, 32], strides = [1, 1]} : vector<8x128xf32> to vector<8x32xf32>
    %141 = vector.extract_strided_slice %138 {offsets = [0, 64], sizes = [8, 32], strides = [1, 1]} : vector<8x128xf32> to vector<8x32xf32>
    %142 = vector.extract_strided_slice %137 {offsets = [0, 96], sizes = [8, 32], strides = [1, 1]} : vector<8x128xf32> to vector<8x32xf32>
    %143 = arith.mulf %140, %104 : vector<8x32xf32>
    %144 = arith.mulf %139, %141 : vector<8x32xf32>
    %145 = arith.addf %143, %144 : vector<8x32xf32>
    %146 = math.tanh %145 : vector<8x32xf32>
    %147 = arith.mulf %142, %146 : vector<8x32xf32>
    %148 = arith.negf %132 : vector<8x128xf32>
    %149 = math.exp %148 : vector<8x128xf32>
    %cst_44 = arith.constant 1.000000e+00 : f32
    %150 = vector.broadcast %cst_44 : f32 to vector<8x128xf32>
    %151 = arith.addf %150, %149 : vector<8x128xf32>
    %152 = arith.divf %150, %151 : vector<8x128xf32>
    %153 = math.tanh %132 : vector<8x128xf32>
    %154 = vector.extract_strided_slice %152 {offsets = [0, 0], sizes = [8, 32], strides = [1, 1]} : vector<8x128xf32> to vector<8x32xf32>
    %155 = vector.extract_strided_slice %152 {offsets = [0, 32], sizes = [8, 32], strides = [1, 1]} : vector<8x128xf32> to vector<8x32xf32>
    %156 = vector.extract_strided_slice %153 {offsets = [0, 64], sizes = [8, 32], strides = [1, 1]} : vector<8x128xf32> to vector<8x32xf32>
    %157 = vector.extract_strided_slice %152 {offsets = [0, 96], sizes = [8, 32], strides = [1, 1]} : vector<8x128xf32> to vector<8x32xf32>
    %158 = arith.mulf %155, %119 : vector<8x32xf32>
    %159 = arith.mulf %154, %156 : vector<8x32xf32>
    %160 = arith.addf %158, %159 : vector<8x32xf32>
    %161 = math.tanh %160 : vector<8x32xf32>
    %162 = arith.mulf %157, %161 : vector<8x32xf32>
    %c24_45 = arith.constant 24 : index
    %c0_46 = arith.constant 0 : index
    %163 = vector.load %arg10[%c24_45, %c0_46] : memref<64x64xf32, #tpu.memory_space<vmem>>, vector<8x32xf32>
    tpu.vector_store %arg10[%c24_45, %c0_46], %147 {strides = array<i32>} : memref<64x64xf32, #tpu.memory_space<vmem>>, vector<8x32xf32>,
    %c32_47 = arith.constant 32 : index
    %c32_48 = arith.constant 32 : index
    %164 = vector.load %arg10[%c32_47, %c32_48] : memref<64x64xf32, #tpu.memory_space<vmem>>, vector<8x32xf32>
    tpu.vector_store %arg10[%c32_47, %c32_48], %162 {strides = array<i32>} : memref<64x64xf32, #tpu.memory_space<vmem>>, vector<8x32xf32>,
    %c32_49 = arith.constant 32 : index
    %c0_50 = arith.constant 0 : index
    %165 = vector.load %arg11[%c32_49, %c0_50] : memref<64x256xf32, #tpu.memory_space<vmem>>, vector<8x128xf32>
    %c24_51 = arith.constant 24 : index
    %c128_52 = arith.constant 128 : index
    %166 = vector.load %arg11[%c24_51, %c128_52] : memref<64x256xf32, #tpu.memory_space<vmem>>, vector<8x128xf32>
    %167 = tpu.concatenate %147, %162 in 1 : vector<8x32xf32>, vector<8x32xf32> -> vector<8x64xf32>
    %c0_53 = arith.constant 0 : index
    %c0_54 = arith.constant 0 : index
    %168 = vector.load %arg3[%c0_53, %c0_54] : memref<64x256xf32, #tpu.memory_space<vmem>>, vector<64x256xf32>
    %cst_55 = arith.constant dense<0.000000e+00> : vector<8x256xf32>
    %169 = tpu.matmul %167, %168, %cst_55 {dimension_numbers = #tpu.dot_dimension_numbers<[1], [0], [0], [1], [0, 0, 1, 1], [], []>} : vector<8x64xf32>, vector<64x256xf32>, vector<8x256xf32> -> vector<8x256xf32>
    %170 = vector.extract_strided_slice %169 {offsets = [0, 0], sizes = [8, 128], strides = [1, 1]} : vector<8x256xf32> to vector<8x128xf32>
    %171 = arith.addf %165, %170 : vector<8x128xf32>
    %172 = vector.extract_strided_slice %169 {offsets = [0, 128], sizes = [8, 128], strides = [1, 1]} : vector<8x256xf32> to vector<8x128xf32>
    %173 = arith.addf %166, %172 : vector<8x128xf32>
    %174 = arith.negf %171 : vector<8x128xf32>
    %175 = math.exp %174 : vector<8x128xf32>
    %cst_56 = arith.constant 1.000000e+00 : f32
    %176 = vector.broadcast %cst_56 : f32 to vector<8x128xf32>
    %177 = arith.addf %176, %175 : vector<8x128xf32>
    %178 = arith.divf %176, %177 : vector<8x128xf32>
    %179 = math.tanh %171 : vector<8x128xf32>
    %180 = vector.extract_strided_slice %178 {offsets = [0, 0], sizes = [8, 32], strides = [1, 1]} : vector<8x128xf32> to vector<8x32xf32>
    %181 = vector.extract_strided_slice %178 {offsets = [0, 32], sizes = [8, 32], strides = [1, 1]} : vector<8x128xf32> to vector<8x32xf32>
    %182 = vector.extract_strided_slice %179 {offsets = [0, 64], sizes = [8, 32], strides = [1, 1]} : vector<8x128xf32> to vector<8x32xf32>
    %183 = vector.extract_strided_slice %178 {offsets = [0, 96], sizes = [8, 32], strides = [1, 1]} : vector<8x128xf32> to vector<8x32xf32>
    %184 = arith.mulf %181, %145 : vector<8x32xf32>
    %185 = arith.mulf %180, %182 : vector<8x32xf32>
    %186 = arith.addf %184, %185 : vector<8x32xf32>
    %187 = math.tanh %186 : vector<8x32xf32>
    %188 = arith.mulf %183, %187 : vector<8x32xf32>
    %189 = arith.negf %173 : vector<8x128xf32>
    %190 = math.exp %189 : vector<8x128xf32>
    %cst_57 = arith.constant 1.000000e+00 : f32
    %191 = vector.broadcast %cst_57 : f32 to vector<8x128xf32>
    %192 = arith.addf %191, %190 : vector<8x128xf32>
    %193 = arith.divf %191, %192 : vector<8x128xf32>
    %194 = math.tanh %173 : vector<8x128xf32>
    %195 = vector.extract_strided_slice %193 {offsets = [0, 0], sizes = [8, 32], strides = [1, 1]} : vector<8x128xf32> to vector<8x32xf32>
    %196 = vector.extract_strided_slice %193 {offsets = [0, 32], sizes = [8, 32], strides = [1, 1]} : vector<8x128xf32> to vector<8x32xf32>
    %197 = vector.extract_strided_slice %194 {offsets = [0, 64], sizes = [8, 32], strides = [1, 1]} : vector<8x128xf32> to vector<8x32xf32>
    %198 = vector.extract_strided_slice %193 {offsets = [0, 96], sizes = [8, 32], strides = [1, 1]} : vector<8x128xf32> to vector<8x32xf32>
    %199 = arith.mulf %196, %160 : vector<8x32xf32>
    %200 = arith.mulf %195, %197 : vector<8x32xf32>
    %201 = arith.addf %199, %200 : vector<8x32xf32>
    %202 = math.tanh %201 : vector<8x32xf32>
    %203 = arith.mulf %198, %202 : vector<8x32xf32>
    %c32_58 = arith.constant 32 : index
    %c0_59 = arith.constant 0 : index
    %204 = vector.load %arg10[%c32_58, %c0_59] : memref<64x64xf32, #tpu.memory_space<vmem>>, vector<8x32xf32>
    tpu.vector_store %arg10[%c32_58, %c0_59], %188 {strides = array<i32>} : memref<64x64xf32, #tpu.memory_space<vmem>>, vector<8x32xf32>,
    %c24_60 = arith.constant 24 : index
    %c32_61 = arith.constant 32 : index
    %205 = vector.load %arg10[%c24_60, %c32_61] : memref<64x64xf32, #tpu.memory_space<vmem>>, vector<8x32xf32>
    tpu.vector_store %arg10[%c24_60, %c32_61], %203 {strides = array<i32>} : memref<64x64xf32, #tpu.memory_space<vmem>>, vector<8x32xf32>,
    %c40_62 = arith.constant 40 : index
    %c0_63 = arith.constant 0 : index
    %206 = vector.load %arg11[%c40_62, %c0_63] : memref<64x256xf32, #tpu.memory_space<vmem>>, vector<8x128xf32>
    %c16_64 = arith.constant 16 : index
    %c128_65 = arith.constant 128 : index
    %207 = vector.load %arg11[%c16_64, %c128_65] : memref<64x256xf32, #tpu.memory_space<vmem>>, vector<8x128xf32>
    %208 = tpu.concatenate %188, %203 in 1 : vector<8x32xf32>, vector<8x32xf32> -> vector<8x64xf32>
    %c0_66 = arith.constant 0 : index
    %c0_67 = arith.constant 0 : index
    %209 = vector.load %arg3[%c0_66, %c0_67] : memref<64x256xf32, #tpu.memory_space<vmem>>, vector<64x256xf32>
    %cst_68 = arith.constant dense<0.000000e+00> : vector<8x256xf32>
    %210 = tpu.matmul %208, %209, %cst_68 {dimension_numbers = #tpu.dot_dimension_numbers<[1], [0], [0], [1], [0, 0, 1, 1], [], []>} : vector<8x64xf32>, vector<64x256xf32>, vector<8x256xf32> -> vector<8x256xf32>
    %211 = vector.extract_strided_slice %210 {offsets = [0, 0], sizes = [8, 128], strides = [1, 1]} : vector<8x256xf32> to vector<8x128xf32>
    %212 = arith.addf %206, %211 : vector<8x128xf32>
    %213 = vector.extract_strided_slice %210 {offsets = [0, 128], sizes = [8, 128], strides = [1, 1]} : vector<8x256xf32> to vector<8x128xf32>
    %214 = arith.addf %207, %213 : vector<8x128xf32>
    %215 = arith.negf %212 : vector<8x128xf32>
    %216 = math.exp %215 : vector<8x128xf32>
    %cst_69 = arith.constant 1.000000e+00 : f32
    %217 = vector.broadcast %cst_69 : f32 to vector<8x128xf32>
    %218 = arith.addf %217, %216 : vector<8x128xf32>
    %219 = arith.divf %217, %218 : vector<8x128xf32>
    %220 = math.tanh %212 : vector<8x128xf32>
    %221 = vector.extract_strided_slice %219 {offsets = [0, 0], sizes = [8, 32], strides = [1, 1]} : vector<8x128xf32> to vector<8x32xf32>
    %222 = vector.extract_strided_slice %219 {offsets = [0, 32], sizes = [8, 32], strides = [1, 1]} : vector<8x128xf32> to vector<8x32xf32>
    %223 = vector.extract_strided_slice %220 {offsets = [0, 64], sizes = [8, 32], strides = [1, 1]} : vector<8x128xf32> to vector<8x32xf32>
    %224 = vector.extract_strided_slice %219 {offsets = [0, 96], sizes = [8, 32], strides = [1, 1]} : vector<8x128xf32> to vector<8x32xf32>
    %225 = arith.mulf %222, %186 : vector<8x32xf32>
    %226 = arith.mulf %221, %223 : vector<8x32xf32>
    %227 = arith.addf %225, %226 : vector<8x32xf32>
    %228 = math.tanh %227 : vector<8x32xf32>
    %229 = arith.mulf %224, %228 : vector<8x32xf32>
    %230 = arith.negf %214 : vector<8x128xf32>
    %231 = math.exp %230 : vector<8x128xf32>
    %cst_70 = arith.constant 1.000000e+00 : f32
    %232 = vector.broadcast %cst_70 : f32 to vector<8x128xf32>
    %233 = arith.addf %232, %231 : vector<8x128xf32>
    %234 = arith.divf %232, %233 : vector<8x128xf32>
    %235 = math.tanh %214 : vector<8x128xf32>
    %236 = vector.extract_strided_slice %234 {offsets = [0, 0], sizes = [8, 32], strides = [1, 1]} : vector<8x128xf32> to vector<8x32xf32>
    %237 = vector.extract_strided_slice %234 {offsets = [0, 32], sizes = [8, 32], strides = [1, 1]} : vector<8x128xf32> to vector<8x32xf32>
    %238 = vector.extract_strided_slice %235 {offsets = [0, 64], sizes = [8, 32], strides = [1, 1]} : vector<8x128xf32> to vector<8x32xf32>
    %239 = vector.extract_strided_slice %234 {offsets = [0, 96], sizes = [8, 32], strides = [1, 1]} : vector<8x128xf32> to vector<8x32xf32>
    %240 = arith.mulf %237, %201 : vector<8x32xf32>
    %241 = arith.mulf %236, %238 : vector<8x32xf32>
    %242 = arith.addf %240, %241 : vector<8x32xf32>
    %243 = math.tanh %242 : vector<8x32xf32>
    %244 = arith.mulf %239, %243 : vector<8x32xf32>
    %c40_71 = arith.constant 40 : index
    %c0_72 = arith.constant 0 : index
    %245 = vector.load %arg10[%c40_71, %c0_72] : memref<64x64xf32, #tpu.memory_space<vmem>>, vector<8x32xf32>
    tpu.vector_store %arg10[%c40_71, %c0_72], %229 {strides = array<i32>} : memref<64x64xf32, #tpu.memory_space<vmem>>, vector<8x32xf32>,
    %c16_73 = arith.constant 16 : index
    %c32_74 = arith.constant 32 : index
    %246 = vector.load %arg10[%c16_73, %c32_74] : memref<64x64xf32, #tpu.memory_space<vmem>>, vector<8x32xf32>
    tpu.vector_store %arg10[%c16_73, %c32_74], %244 {strides = array<i32>} : memref<64x64xf32, #tpu.memory_space<vmem>>, vector<8x32xf32>,
    %c48_75 = arith.constant 48 : index
    %c0_76 = arith.constant 0 : index
    %247 = vector.load %arg11[%c48_75, %c0_76] : memref<64x256xf32, #tpu.memory_space<vmem>>, vector<8x128xf32>
    %c8_77 = arith.constant 8 : index
    %c128_78 = arith.constant 128 : index
    %248 = vector.load %arg11[%c8_77, %c128_78] : memref<64x256xf32, #tpu.memory_space<vmem>>, vector<8x128xf32>
    %249 = tpu.concatenate %229, %244 in 1 : vector<8x32xf32>, vector<8x32xf32> -> vector<8x64xf32>
    %c0_79 = arith.constant 0 : index
    %c0_80 = arith.constant 0 : index
    %250 = vector.load %arg3[%c0_79, %c0_80] : memref<64x256xf32, #tpu.memory_space<vmem>>, vector<64x256xf32>
    %cst_81 = arith.constant dense<0.000000e+00> : vector<8x256xf32>
    %251 = tpu.matmul %249, %250, %cst_81 {dimension_numbers = #tpu.dot_dimension_numbers<[1], [0], [0], [1], [0, 0, 1, 1], [], []>} : vector<8x64xf32>, vector<64x256xf32>, vector<8x256xf32> -> vector<8x256xf32>
    %252 = vector.extract_strided_slice %251 {offsets = [0, 0], sizes = [8, 128], strides = [1, 1]} : vector<8x256xf32> to vector<8x128xf32>
    %253 = arith.addf %247, %252 : vector<8x128xf32>
    %254 = vector.extract_strided_slice %251 {offsets = [0, 128], sizes = [8, 128], strides = [1, 1]} : vector<8x256xf32> to vector<8x128xf32>
    %255 = arith.addf %248, %254 : vector<8x128xf32>
    %256 = arith.negf %253 : vector<8x128xf32>
    %257 = math.exp %256 : vector<8x128xf32>
    %cst_82 = arith.constant 1.000000e+00 : f32
    %258 = vector.broadcast %cst_82 : f32 to vector<8x128xf32>
    %259 = arith.addf %258, %257 : vector<8x128xf32>
    %260 = arith.divf %258, %259 : vector<8x128xf32>
    %261 = math.tanh %253 : vector<8x128xf32>
    %262 = vector.extract_strided_slice %260 {offsets = [0, 0], sizes = [8, 32], strides = [1, 1]} : vector<8x128xf32> to vector<8x32xf32>
    %263 = vector.extract_strided_slice %260 {offsets = [0, 32], sizes = [8, 32], strides = [1, 1]} : vector<8x128xf32> to vector<8x32xf32>
    %264 = vector.extract_strided_slice %261 {offsets = [0, 64], sizes = [8, 32], strides = [1, 1]} : vector<8x128xf32> to vector<8x32xf32>
    %265 = vector.extract_strided_slice %260 {offsets = [0, 96], sizes = [8, 32], strides = [1, 1]} : vector<8x128xf32> to vector<8x32xf32>
    %266 = arith.mulf %263, %227 : vector<8x32xf32>
    %267 = arith.mulf %262, %264 : vector<8x32xf32>
    %268 = arith.addf %266, %267 : vector<8x32xf32>
    %269 = math.tanh %268 : vector<8x32xf32>
    %270 = arith.mulf %265, %269 : vector<8x32xf32>
    %271 = arith.negf %255 : vector<8x128xf32>
    %272 = math.exp %271 : vector<8x128xf32>
    %cst_83 = arith.constant 1.000000e+00 : f32
    %273 = vector.broadcast %cst_83 : f32 to vector<8x128xf32>
    %274 = arith.addf %273, %272 : vector<8x128xf32>
    %275 = arith.divf %273, %274 : vector<8x128xf32>
    %276 = math.tanh %255 : vector<8x128xf32>
    %277 = vector.extract_strided_slice %275 {offsets = [0, 0], sizes = [8, 32], strides = [1, 1]} : vector<8x128xf32> to vector<8x32xf32>
    %278 = vector.extract_strided_slice %275 {offsets = [0, 32], sizes = [8, 32], strides = [1, 1]} : vector<8x128xf32> to vector<8x32xf32>
    %279 = vector.extract_strided_slice %276 {offsets = [0, 64], sizes = [8, 32], strides = [1, 1]} : vector<8x128xf32> to vector<8x32xf32>
    %280 = vector.extract_strided_slice %275 {offsets = [0, 96], sizes = [8, 32], strides = [1, 1]} : vector<8x128xf32> to vector<8x32xf32>
    %281 = arith.mulf %278, %242 : vector<8x32xf32>
    %282 = arith.mulf %277, %279 : vector<8x32xf32>
    %283 = arith.addf %281, %282 : vector<8x32xf32>
    %284 = math.tanh %283 : vector<8x32xf32>
    %285 = arith.mulf %280, %284 : vector<8x32xf32>
    %c48_84 = arith.constant 48 : index
    %c0_85 = arith.constant 0 : index
    %286 = vector.load %arg10[%c48_84, %c0_85] : memref<64x64xf32, #tpu.memory_space<vmem>>, vector<8x32xf32>
    tpu.vector_store %arg10[%c48_84, %c0_85], %270 {strides = array<i32>} : memref<64x64xf32, #tpu.memory_space<vmem>>, vector<8x32xf32>,
    %c8_86 = arith.constant 8 : index
    %c32_87 = arith.constant 32 : index
    %287 = vector.load %arg10[%c8_86, %c32_87] : memref<64x64xf32, #tpu.memory_space<vmem>>, vector<8x32xf32>
    tpu.vector_store %arg10[%c8_86, %c32_87], %285 {strides = array<i32>} : memref<64x64xf32, #tpu.memory_space<vmem>>, vector<8x32xf32>,
    %c56_88 = arith.constant 56 : index
    %c0_89 = arith.constant 0 : index
    %288 = vector.load %arg11[%c56_88, %c0_89] : memref<64x256xf32, #tpu.memory_space<vmem>>, vector<8x128xf32>
    %c0_90 = arith.constant 0 : index
    %c128_91 = arith.constant 128 : index
    %289 = vector.load %arg11[%c0_90, %c128_91] : memref<64x256xf32, #tpu.memory_space<vmem>>, vector<8x128xf32>
    %290 = tpu.concatenate %270, %285 in 1 : vector<8x32xf32>, vector<8x32xf32> -> vector<8x64xf32>
    %c0_92 = arith.constant 0 : index
    %c0_93 = arith.constant 0 : index
    %291 = vector.load %arg3[%c0_92, %c0_93] : memref<64x256xf32, #tpu.memory_space<vmem>>, vector<64x256xf32>
    %cst_94 = arith.constant dense<0.000000e+00> : vector<8x256xf32>
    %292 = tpu.matmul %290, %291, %cst_94 {dimension_numbers = #tpu.dot_dimension_numbers<[1], [0], [0], [1], [0, 0, 1, 1], [], []>} : vector<8x64xf32>, vector<64x256xf32>, vector<8x256xf32> -> vector<8x256xf32>
    %293 = vector.extract_strided_slice %292 {offsets = [0, 0], sizes = [8, 128], strides = [1, 1]} : vector<8x256xf32> to vector<8x128xf32>
    %294 = arith.addf %288, %293 : vector<8x128xf32>
    %295 = vector.extract_strided_slice %292 {offsets = [0, 128], sizes = [8, 128], strides = [1, 1]} : vector<8x256xf32> to vector<8x128xf32>
    %296 = arith.addf %289, %295 : vector<8x128xf32>
    %297 = arith.negf %294 : vector<8x128xf32>
    %298 = math.exp %297 : vector<8x128xf32>
    %cst_95 = arith.constant 1.000000e+00 : f32
    %299 = vector.broadcast %cst_95 : f32 to vector<8x128xf32>
    %300 = arith.addf %299, %298 : vector<8x128xf32>
    %301 = arith.divf %299, %300 : vector<8x128xf32>
    %302 = math.tanh %294 : vector<8x128xf32>
    %303 = vector.extract_strided_slice %301 {offsets = [0, 0], sizes = [8, 32], strides = [1, 1]} : vector<8x128xf32> to vector<8x32xf32>
    %304 = vector.extract_strided_slice %301 {offsets = [0, 32], sizes = [8, 32], strides = [1, 1]} : vector<8x128xf32> to vector<8x32xf32>
    %305 = vector.extract_strided_slice %302 {offsets = [0, 64], sizes = [8, 32], strides = [1, 1]} : vector<8x128xf32> to vector<8x32xf32>
    %306 = vector.extract_strided_slice %301 {offsets = [0, 96], sizes = [8, 32], strides = [1, 1]} : vector<8x128xf32> to vector<8x32xf32>
    %307 = arith.mulf %304, %268 : vector<8x32xf32>
    %308 = arith.mulf %303, %305 : vector<8x32xf32>
    %309 = arith.addf %307, %308 : vector<8x32xf32>
    %310 = math.tanh %309 : vector<8x32xf32>
    %311 = arith.mulf %306, %310 : vector<8x32xf32>
    %312 = arith.negf %296 : vector<8x128xf32>
    %313 = math.exp %312 : vector<8x128xf32>
    %cst_96 = arith.constant 1.000000e+00 : f32
    %314 = vector.broadcast %cst_96 : f32 to vector<8x128xf32>
    %315 = arith.addf %314, %313 : vector<8x128xf32>
    %316 = arith.divf %314, %315 : vector<8x128xf32>
    %317 = math.tanh %296 : vector<8x128xf32>
    %318 = vector.extract_strided_slice %316 {offsets = [0, 0], sizes = [8, 32], strides = [1, 1]} : vector<8x128xf32> to vector<8x32xf32>
    %319 = vector.extract_strided_slice %316 {offsets = [0, 32], sizes = [8, 32], strides = [1, 1]} : vector<8x128xf32> to vector<8x32xf32>
    %320 = vector.extract_strided_slice %317 {offsets = [0, 64], sizes = [8, 32], strides = [1, 1]} : vector<8x128xf32> to vector<8x32xf32>
    %321 = vector.extract_strided_slice %316 {offsets = [0, 96], sizes = [8, 32], strides = [1, 1]} : vector<8x128xf32> to vector<8x32xf32>
    %322 = arith.mulf %319, %283 : vector<8x32xf32>
    %323 = arith.mulf %318, %320 : vector<8x32xf32>
    %324 = arith.addf %322, %323 : vector<8x32xf32>
    %325 = math.tanh %324 : vector<8x32xf32>
    %326 = arith.mulf %321, %325 : vector<8x32xf32>
    %c56_97 = arith.constant 56 : index
    %c0_98 = arith.constant 0 : index
    %327 = vector.load %arg10[%c56_97, %c0_98] : memref<64x64xf32, #tpu.memory_space<vmem>>, vector<8x32xf32>
    tpu.vector_store %arg10[%c56_97, %c0_98], %311 {strides = array<i32>} : memref<64x64xf32, #tpu.memory_space<vmem>>, vector<8x32xf32>,
    %c0_99 = arith.constant 0 : index
    %c32_100 = arith.constant 32 : index
    %328 = vector.load %arg10[%c0_99, %c32_100] : memref<64x64xf32, #tpu.memory_space<vmem>>, vector<8x32xf32>
    tpu.vector_store %arg10[%c0_99, %c32_100], %326 {strides = array<i32>} : memref<64x64xf32, #tpu.memory_space<vmem>>, vector<8x32xf32>,
    %c0_101 = arith.constant 0 : index
    %c0_102 = arith.constant 0 : index
    %329 = vector.load %arg10[%c0_101, %c0_102] : memref<64x64xf32, #tpu.memory_space<vmem>>, vector<64x64xf32>
    %330 = arith.truncf %329 : vector<64x64xf32> to vector<64x64xbf16>
    %c0_103 = arith.constant 0 : index
    %c0_104 = arith.constant 0 : index
    %331 = vector.load %arg4[%c0_103, %c0_104] : memref<64x256xbf16, #tpu.memory_space<vmem>>, vector<64x128xbf16>
    %cst_105 = arith.constant dense<0.000000e+00> : vector<64x128xf32>
    %332 = tpu.matmul %330, %331, %cst_105 {dimension_numbers = #tpu.dot_dimension_numbers<[1], [0], [0], [1], [0, 0, 1, 1], [], []>} : vector<64x64xbf16>, vector<64x128xbf16>, vector<64x128xf32> -> vector<64x128xf32>
    %c0_106 = arith.constant 0 : index
    %c0_107 = arith.constant 0 : index
    %333 = vector.load %arg5[%c0_106, %c0_107] : memref<1x256xf32, #tpu.memory_space<vmem>>, vector<1x128xf32>
    %334 = vector.broadcast %333 : vector<1x128xf32> to vector<64x128xf32>
    %335 = arith.addf %332, %334 : vector<64x128xf32>
    %c0_108 = arith.constant 0 : index
    %c0_109 = arith.constant 0 : index
    %336 = vector.load %arg11[%c0_108, %c0_109] : memref<64x256xf32, #tpu.memory_space<vmem>>, vector<64x128xf32>
    tpu.vector_store %arg11[%c0_108, %c0_109], %335 {strides = array<i32>} : memref<64x256xf32, #tpu.memory_space<vmem>>, vector<64x128xf32>,
    %337 = vector.extract_strided_slice %330 {offsets = [56, 0], sizes = [8, 64], strides = [1, 1]} : vector<64x64xbf16> to vector<8x64xbf16>
    %c0_110 = arith.constant 0 : index
    %c128_111 = arith.constant 128 : index
    %338 = vector.load %arg4[%c0_110, %c128_111] : memref<64x256xbf16, #tpu.memory_space<vmem>>, vector<64x128xbf16>
    %cst_112 = arith.constant dense<0.000000e+00> : vector<8x128xf32>
    %339 = tpu.matmul %337, %338, %cst_112 {dimension_numbers = #tpu.dot_dimension_numbers<[1], [0], [0], [1], [0, 0, 1, 1], [], []>} : vector<8x64xbf16>, vector<64x128xbf16>, vector<8x128xf32> -> vector<8x128xf32>
    %c0_113 = arith.constant 0 : index
    %c128_114 = arith.constant 128 : index
    %340 = vector.load %arg5[%c0_113, %c128_114] : memref<1x256xf32, #tpu.memory_space<vmem>>, vector<1x128xf32>
    %341 = vector.broadcast %340 : vector<1x128xf32> to vector<8x128xf32>
    %342 = arith.addf %339, %341 : vector<8x128xf32>
    %343 = arith.negf %342 : vector<8x128xf32>
    %344 = math.exp %343 : vector<8x128xf32>
    %cst_115 = arith.constant 1.000000e+00 : f32
    %345 = vector.broadcast %cst_115 : f32 to vector<8x128xf32>
    %346 = arith.addf %345, %344 : vector<8x128xf32>
    %347 = arith.divf %345, %346 : vector<8x128xf32>
    %348 = math.tanh %342 : vector<8x128xf32>
    %349 = vector.extract_strided_slice %347 {offsets = [0, 0], sizes = [8, 32], strides = [1, 1]} : vector<8x128xf32> to vector<8x32xf32>
    %350 = vector.extract_strided_slice %347 {offsets = [0, 32], sizes = [8, 32], strides = [1, 1]} : vector<8x128xf32> to vector<8x32xf32>
    %351 = vector.extract_strided_slice %348 {offsets = [0, 64], sizes = [8, 32], strides = [1, 1]} : vector<8x128xf32> to vector<8x32xf32>
    %352 = vector.extract_strided_slice %347 {offsets = [0, 96], sizes = [8, 32], strides = [1, 1]} : vector<8x128xf32> to vector<8x32xf32>
    %353 = arith.mulf %350, %0 : vector<8x32xf32>
    %354 = arith.mulf %349, %351 : vector<8x32xf32>
    %355 = arith.addf %353, %354 : vector<8x32xf32>
    %356 = math.tanh %355 : vector<8x32xf32>
    %357 = arith.mulf %352, %356 : vector<8x32xf32>
    %c0_116 = arith.constant 0 : index
    %c0_117 = arith.constant 0 : index
    %358 = vector.load %arg11[%c0_116, %c0_117] : memref<64x256xf32, #tpu.memory_space<vmem>>, vector<8x128xf32>
    %359 = arith.negf %358 : vector<8x128xf32>
    %360 = math.exp %359 : vector<8x128xf32>
    %cst_118 = arith.constant 1.000000e+00 : f32
    %361 = vector.broadcast %cst_118 : f32 to vector<8x128xf32>
    %362 = arith.addf %361, %360 : vector<8x128xf32>
    %363 = arith.divf %361, %362 : vector<8x128xf32>
    %364 = math.tanh %358 : vector<8x128xf32>
    %365 = vector.extract_strided_slice %363 {offsets = [0, 0], sizes = [8, 32], strides = [1, 1]} : vector<8x128xf32> to vector<8x32xf32>
    %366 = vector.extract_strided_slice %363 {offsets = [0, 32], sizes = [8, 32], strides = [1, 1]} : vector<8x128xf32> to vector<8x32xf32>
    %367 = vector.extract_strided_slice %364 {offsets = [0, 64], sizes = [8, 32], strides = [1, 1]} : vector<8x128xf32> to vector<8x32xf32>
    %368 = vector.extract_strided_slice %363 {offsets = [0, 96], sizes = [8, 32], strides = [1, 1]} : vector<8x128xf32> to vector<8x32xf32>
    %369 = arith.mulf %366, %0 : vector<8x32xf32>
    %370 = arith.mulf %365, %367 : vector<8x32xf32>
    %371 = arith.addf %369, %370 : vector<8x32xf32>
    %372 = math.tanh %371 : vector<8x32xf32>
    %373 = arith.mulf %368, %372 : vector<8x32xf32>
    %c8_119 = arith.constant 8 : index
    %c0_120 = arith.constant 0 : index
    %374 = vector.load %arg11[%c8_119, %c0_120] : memref<64x256xf32, #tpu.memory_space<vmem>>, vector<8x128xf32>
    %c0_121 = arith.constant 0 : index
    %c0_122 = arith.constant 0 : index
    %375 = vector.load %arg6[%c0_121, %c0_122] : memref<64x256xf32, #tpu.memory_space<vmem>>, vector<32x128xf32>
    %cst_123 = arith.constant dense<0.000000e+00> : vector<8x128xf32>
    %376 = tpu.matmul %373, %375, %cst_123 {dimension_numbers = #tpu.dot_dimension_numbers<[1], [0], [0], [1], [0, 0, 1, 1], [], []>} : vector<8x32xf32>, vector<32x128xf32>, vector<8x128xf32> -> vector<8x128xf32>
    %377 = arith.addf %374, %376 : vector<8x128xf32>
    %378 = arith.negf %377 : vector<8x128xf32>
    %379 = math.exp %378 : vector<8x128xf32>
    %cst_124 = arith.constant 1.000000e+00 : f32
    %380 = vector.broadcast %cst_124 : f32 to vector<8x128xf32>
    %381 = arith.addf %380, %379 : vector<8x128xf32>
    %382 = arith.divf %380, %381 : vector<8x128xf32>
    %383 = math.tanh %377 : vector<8x128xf32>
    %384 = vector.extract_strided_slice %382 {offsets = [0, 0], sizes = [8, 32], strides = [1, 1]} : vector<8x128xf32> to vector<8x32xf32>
    %385 = vector.extract_strided_slice %382 {offsets = [0, 32], sizes = [8, 32], strides = [1, 1]} : vector<8x128xf32> to vector<8x32xf32>
    %386 = vector.extract_strided_slice %383 {offsets = [0, 64], sizes = [8, 32], strides = [1, 1]} : vector<8x128xf32> to vector<8x32xf32>
    %387 = vector.extract_strided_slice %382 {offsets = [0, 96], sizes = [8, 32], strides = [1, 1]} : vector<8x128xf32> to vector<8x32xf32>
    %388 = arith.mulf %385, %371 : vector<8x32xf32>
    %389 = arith.mulf %384, %386 : vector<8x32xf32>
    %390 = arith.addf %388, %389 : vector<8x32xf32>
    %391 = math.tanh %390 : vector<8x32xf32>
    %392 = arith.mulf %387, %391 : vector<8x32xf32>
    %c16_125 = arith.constant 16 : index
    %c0_126 = arith.constant 0 : index
    %393 = vector.load %arg11[%c16_125, %c0_126] : memref<64x256xf32, #tpu.memory_space<vmem>>, vector<8x128xf32>
    %c0_127 = arith.constant 0 : index
    %c0_128 = arith.constant 0 : index
    %394 = vector.load %arg6[%c0_127, %c0_128] : memref<64x256xf32, #tpu.memory_space<vmem>>, vector<32x128xf32>
    %cst_129 = arith.constant dense<0.000000e+00> : vector<8x128xf32>
    %395 = tpu.matmul %392, %394, %cst_129 {dimension_numbers = #tpu.dot_dimension_numbers<[1], [0], [0], [1], [0, 0, 1, 1], [], []>} : vector<8x32xf32>, vector<32x128xf32>, vector<8x128xf32> -> vector<8x128xf32>
    %396 = arith.addf %393, %395 : vector<8x128xf32>
    %397 = arith.negf %396 : vector<8x128xf32>
    %398 = math.exp %397 : vector<8x128xf32>
    %cst_130 = arith.constant 1.000000e+00 : f32
    %399 = vector.broadcast %cst_130 : f32 to vector<8x128xf32>
    %400 = arith.addf %399, %398 : vector<8x128xf32>
    %401 = arith.divf %399, %400 : vector<8x128xf32>
    %402 = math.tanh %396 : vector<8x128xf32>
    %403 = vector.extract_strided_slice %401 {offsets = [0, 0], sizes = [8, 32], strides = [1, 1]} : vector<8x128xf32> to vector<8x32xf32>
    %404 = vector.extract_strided_slice %401 {offsets = [0, 32], sizes = [8, 32], strides = [1, 1]} : vector<8x128xf32> to vector<8x32xf32>
    %405 = vector.extract_strided_slice %402 {offsets = [0, 64], sizes = [8, 32], strides = [1, 1]} : vector<8x128xf32> to vector<8x32xf32>
    %406 = vector.extract_strided_slice %401 {offsets = [0, 96], sizes = [8, 32], strides = [1, 1]} : vector<8x128xf32> to vector<8x32xf32>
    %407 = arith.mulf %404, %390 : vector<8x32xf32>
    %408 = arith.mulf %403, %405 : vector<8x32xf32>
    %409 = arith.addf %407, %408 : vector<8x32xf32>
    %410 = math.tanh %409 : vector<8x32xf32>
    %411 = arith.mulf %406, %410 : vector<8x32xf32>
    %c24_131 = arith.constant 24 : index
    %c0_132 = arith.constant 0 : index
    %412 = vector.load %arg11[%c24_131, %c0_132] : memref<64x256xf32, #tpu.memory_space<vmem>>, vector<8x128xf32>
    %c0_133 = arith.constant 0 : index
    %c0_134 = arith.constant 0 : index
    %413 = vector.load %arg6[%c0_133, %c0_134] : memref<64x256xf32, #tpu.memory_space<vmem>>, vector<32x128xf32>
    %cst_135 = arith.constant dense<0.000000e+00> : vector<8x128xf32>
    %414 = tpu.matmul %411, %413, %cst_135 {dimension_numbers = #tpu.dot_dimension_numbers<[1], [0], [0], [1], [0, 0, 1, 1], [], []>} : vector<8x32xf32>, vector<32x128xf32>, vector<8x128xf32> -> vector<8x128xf32>
    %415 = arith.addf %412, %414 : vector<8x128xf32>
    %416 = arith.negf %415 : vector<8x128xf32>
    %417 = math.exp %416 : vector<8x128xf32>
    %cst_136 = arith.constant 1.000000e+00 : f32
    %418 = vector.broadcast %cst_136 : f32 to vector<8x128xf32>
    %419 = arith.addf %418, %417 : vector<8x128xf32>
    %420 = arith.divf %418, %419 : vector<8x128xf32>
    %421 = math.tanh %415 : vector<8x128xf32>
    %422 = vector.extract_strided_slice %420 {offsets = [0, 0], sizes = [8, 32], strides = [1, 1]} : vector<8x128xf32> to vector<8x32xf32>
    %423 = vector.extract_strided_slice %420 {offsets = [0, 32], sizes = [8, 32], strides = [1, 1]} : vector<8x128xf32> to vector<8x32xf32>
    %424 = vector.extract_strided_slice %421 {offsets = [0, 64], sizes = [8, 32], strides = [1, 1]} : vector<8x128xf32> to vector<8x32xf32>
    %425 = vector.extract_strided_slice %420 {offsets = [0, 96], sizes = [8, 32], strides = [1, 1]} : vector<8x128xf32> to vector<8x32xf32>
    %426 = arith.mulf %423, %409 : vector<8x32xf32>
    %427 = arith.mulf %422, %424 : vector<8x32xf32>
    %428 = arith.addf %426, %427 : vector<8x32xf32>
    %429 = math.tanh %428 : vector<8x32xf32>
    %430 = arith.mulf %425, %429 : vector<8x32xf32>
    %c32_137 = arith.constant 32 : index
    %c0_138 = arith.constant 0 : index
    %431 = vector.load %arg11[%c32_137, %c0_138] : memref<64x256xf32, #tpu.memory_space<vmem>>, vector<8x128xf32>
    %c0_139 = arith.constant 0 : index
    %c0_140 = arith.constant 0 : index
    %432 = vector.load %arg6[%c0_139, %c0_140] : memref<64x256xf32, #tpu.memory_space<vmem>>, vector<32x128xf32>
    %cst_141 = arith.constant dense<0.000000e+00> : vector<8x128xf32>
    %433 = tpu.matmul %430, %432, %cst_141 {dimension_numbers = #tpu.dot_dimension_numbers<[1], [0], [0], [1], [0, 0, 1, 1], [], []>} : vector<8x32xf32>, vector<32x128xf32>, vector<8x128xf32> -> vector<8x128xf32>
    %434 = arith.addf %431, %433 : vector<8x128xf32>
    %435 = arith.negf %434 : vector<8x128xf32>
    %436 = math.exp %435 : vector<8x128xf32>
    %cst_142 = arith.constant 1.000000e+00 : f32
    %437 = vector.broadcast %cst_142 : f32 to vector<8x128xf32>
    %438 = arith.addf %437, %436 : vector<8x128xf32>
    %439 = arith.divf %437, %438 : vector<8x128xf32>
    %440 = math.tanh %434 : vector<8x128xf32>
    %441 = vector.extract_strided_slice %439 {offsets = [0, 0], sizes = [8, 32], strides = [1, 1]} : vector<8x128xf32> to vector<8x32xf32>
    %442 = vector.extract_strided_slice %439 {offsets = [0, 32], sizes = [8, 32], strides = [1, 1]} : vector<8x128xf32> to vector<8x32xf32>
    %443 = vector.extract_strided_slice %440 {offsets = [0, 64], sizes = [8, 32], strides = [1, 1]} : vector<8x128xf32> to vector<8x32xf32>
    %444 = vector.extract_strided_slice %439 {offsets = [0, 96], sizes = [8, 32], strides = [1, 1]} : vector<8x128xf32> to vector<8x32xf32>
    %445 = arith.mulf %442, %428 : vector<8x32xf32>
    %446 = arith.mulf %441, %443 : vector<8x32xf32>
    %447 = arith.addf %445, %446 : vector<8x32xf32>
    %448 = math.tanh %447 : vector<8x32xf32>
    %449 = arith.mulf %444, %448 : vector<8x32xf32>
    %c40_143 = arith.constant 40 : index
    %c0_144 = arith.constant 0 : index
    %450 = vector.load %arg11[%c40_143, %c0_144] : memref<64x256xf32, #tpu.memory_space<vmem>>, vector<8x128xf32>
    %c0_145 = arith.constant 0 : index
    %c0_146 = arith.constant 0 : index
    %451 = vector.load %arg6[%c0_145, %c0_146] : memref<64x256xf32, #tpu.memory_space<vmem>>, vector<32x128xf32>
    %cst_147 = arith.constant dense<0.000000e+00> : vector<8x128xf32>
    %452 = tpu.matmul %449, %451, %cst_147 {dimension_numbers = #tpu.dot_dimension_numbers<[1], [0], [0], [1], [0, 0, 1, 1], [], []>} : vector<8x32xf32>, vector<32x128xf32>, vector<8x128xf32> -> vector<8x128xf32>
    %453 = arith.addf %450, %452 : vector<8x128xf32>
    %454 = arith.negf %453 : vector<8x128xf32>
    %455 = math.exp %454 : vector<8x128xf32>
    %cst_148 = arith.constant 1.000000e+00 : f32
    %456 = vector.broadcast %cst_148 : f32 to vector<8x128xf32>
    %457 = arith.addf %456, %455 : vector<8x128xf32>
    %458 = arith.divf %456, %457 : vector<8x128xf32>
    %459 = math.tanh %453 : vector<8x128xf32>
    %460 = vector.extract_strided_slice %458 {offsets = [0, 0], sizes = [8, 32], strides = [1, 1]} : vector<8x128xf32> to vector<8x32xf32>
    %461 = vector.extract_strided_slice %458 {offsets = [0, 32], sizes = [8, 32], strides = [1, 1]} : vector<8x128xf32> to vector<8x32xf32>
    %462 = vector.extract_strided_slice %459 {offsets = [0, 64], sizes = [8, 32], strides = [1, 1]} : vector<8x128xf32> to vector<8x32xf32>
    %463 = vector.extract_strided_slice %458 {offsets = [0, 96], sizes = [8, 32], strides = [1, 1]} : vector<8x128xf32> to vector<8x32xf32>
    %464 = arith.mulf %461, %447 : vector<8x32xf32>
    %465 = arith.mulf %460, %462 : vector<8x32xf32>
    %466 = arith.addf %464, %465 : vector<8x32xf32>
    %467 = math.tanh %466 : vector<8x32xf32>
    %468 = arith.mulf %463, %467 : vector<8x32xf32>
    %c48_149 = arith.constant 48 : index
    %c0_150 = arith.constant 0 : index
    %469 = vector.load %arg11[%c48_149, %c0_150] : memref<64x256xf32, #tpu.memory_space<vmem>>, vector<8x128xf32>
    %c0_151 = arith.constant 0 : index
    %c0_152 = arith.constant 0 : index
    %470 = vector.load %arg6[%c0_151, %c0_152] : memref<64x256xf32, #tpu.memory_space<vmem>>, vector<32x128xf32>
    %cst_153 = arith.constant dense<0.000000e+00> : vector<8x128xf32>
    %471 = tpu.matmul %468, %470, %cst_153 {dimension_numbers = #tpu.dot_dimension_numbers<[1], [0], [0], [1], [0, 0, 1, 1], [], []>} : vector<8x32xf32>, vector<32x128xf32>, vector<8x128xf32> -> vector<8x128xf32>
    %472 = arith.addf %469, %471 : vector<8x128xf32>
    %473 = arith.negf %472 : vector<8x128xf32>
    %474 = math.exp %473 : vector<8x128xf32>
    %cst_154 = arith.constant 1.000000e+00 : f32
    %475 = vector.broadcast %cst_154 : f32 to vector<8x128xf32>
    %476 = arith.addf %475, %474 : vector<8x128xf32>
    %477 = arith.divf %475, %476 : vector<8x128xf32>
    %478 = math.tanh %472 : vector<8x128xf32>
    %479 = vector.extract_strided_slice %477 {offsets = [0, 0], sizes = [8, 32], strides = [1, 1]} : vector<8x128xf32> to vector<8x32xf32>
    %480 = vector.extract_strided_slice %477 {offsets = [0, 32], sizes = [8, 32], strides = [1, 1]} : vector<8x128xf32> to vector<8x32xf32>
    %481 = vector.extract_strided_slice %478 {offsets = [0, 64], sizes = [8, 32], strides = [1, 1]} : vector<8x128xf32> to vector<8x32xf32>
    %482 = vector.extract_strided_slice %477 {offsets = [0, 96], sizes = [8, 32], strides = [1, 1]} : vector<8x128xf32> to vector<8x32xf32>
    %483 = arith.mulf %480, %466 : vector<8x32xf32>
    %484 = arith.mulf %479, %481 : vector<8x32xf32>
    %485 = arith.addf %483, %484 : vector<8x32xf32>
    %486 = math.tanh %485 : vector<8x32xf32>
    %487 = arith.mulf %482, %486 : vector<8x32xf32>
    %c56_155 = arith.constant 56 : index
    %c0_156 = arith.constant 0 : index
    %488 = vector.load %arg11[%c56_155, %c0_156] : memref<64x256xf32, #tpu.memory_space<vmem>>, vector<8x128xf32>
    %c0_157 = arith.constant 0 : index
    %c0_158 = arith.constant 0 : index
    %489 = vector.load %arg6[%c0_157, %c0_158] : memref<64x256xf32, #tpu.memory_space<vmem>>, vector<32x128xf32>
    %cst_159 = arith.constant dense<0.000000e+00> : vector<8x128xf32>
    %490 = tpu.matmul %487, %489, %cst_159 {dimension_numbers = #tpu.dot_dimension_numbers<[1], [0], [0], [1], [0, 0, 1, 1], [], []>} : vector<8x32xf32>, vector<32x128xf32>, vector<8x128xf32> -> vector<8x128xf32>
    %491 = arith.addf %488, %490 : vector<8x128xf32>
    %492 = arith.negf %491 : vector<8x128xf32>
    %493 = math.exp %492 : vector<8x128xf32>
    %cst_160 = arith.constant 1.000000e+00 : f32
    %494 = vector.broadcast %cst_160 : f32 to vector<8x128xf32>
    %495 = arith.addf %494, %493 : vector<8x128xf32>
    %496 = arith.divf %494, %495 : vector<8x128xf32>
    %497 = math.tanh %491 : vector<8x128xf32>
    %498 = vector.extract_strided_slice %496 {offsets = [0, 0], sizes = [8, 32], strides = [1, 1]} : vector<8x128xf32> to vector<8x32xf32>
    %499 = vector.extract_strided_slice %496 {offsets = [0, 32], sizes = [8, 32], strides = [1, 1]} : vector<8x128xf32> to vector<8x32xf32>
    %500 = vector.extract_strided_slice %497 {offsets = [0, 64], sizes = [8, 32], strides = [1, 1]} : vector<8x128xf32> to vector<8x32xf32>
    %501 = vector.extract_strided_slice %496 {offsets = [0, 96], sizes = [8, 32], strides = [1, 1]} : vector<8x128xf32> to vector<8x32xf32>
    %502 = arith.mulf %499, %485 : vector<8x32xf32>
    %503 = arith.mulf %498, %500 : vector<8x32xf32>
    %504 = arith.addf %502, %503 : vector<8x32xf32>
    %505 = math.tanh %504 : vector<8x32xf32>
    %506 = arith.mulf %501, %505 : vector<8x32xf32>
    %507 = tpu.concatenate %506, %357 in 1 : vector<8x32xf32>, vector<8x32xf32> -> vector<8x64xf32>
    %c0_161 = arith.constant 0 : index
    %c0_162 = arith.constant 0 : index
    %508 = vector.load %arg7[%c0_161, %c0_162] : memref<64x4xf32, #tpu.memory_space<vmem>>, vector<64x4xf32>
    %cst_163 = arith.constant dense<0.000000e+00> : vector<8x4xf32>
    %509 = tpu.matmul %507, %508, %cst_163 {dimension_numbers = #tpu.dot_dimension_numbers<[1], [0], [0], [1], [0, 0, 1, 1], [], []>} : vector<8x64xf32>, vector<64x4xf32>, vector<8x4xf32> -> vector<8x4xf32>
    %c0_164 = arith.constant 0 : index
    %c0_165 = arith.constant 0 : index
    %510 = vector.load %arg8[%c0_164, %c0_165] : memref<1x4xf32, #tpu.memory_space<vmem>>, vector<1x4xf32>
    %511 = vector.broadcast %510 : vector<1x4xf32> to vector<8x4xf32>
    %512 = arith.addf %509, %511 : vector<8x4xf32>
    %c0_166 = arith.constant 0 : index
    %c0_167 = arith.constant 0 : index
    %513 = vector.load %arg9[%c0_166, %c0_167] : memref<8x4xf32, #tpu.memory_space<vmem>>, vector<8x4xf32>
    tpu.vector_store %arg9[%c0_166, %c0_167], %512 {strides = array<i32>} : memref<8x4xf32, #tpu.memory_space<vmem>>, vector<8x4xf32>,
    return
  }
}

</mosaic_0001>

<llo_original>
// kernel: lstm_block_forward.1
$region0: #{lstm_block_forward.1}
  #allocation0 [shape = 'u32[]', space=smem, size = 0x4, offset = 0x4, fixed_abs, tag = 'smem constant byte address 0x4 - core index']
  #allocation1 [shape = 'u32[72,128]{1,0:T(1,128)}', space=vmem, size = 0x9000, scoped, tag = 'internal scratch']
  #allocation2 [shape = 'f32[64,64]{1,0:T(8,128)}', space=vmem, size = 0x8000, scoped, tag = 'scratch operand']
  #allocation3 [shape = 'f32[64,256]{1,0:T(8,128)}', space=vmem, size = 0x10000, scoped, tag = 'scratch operand']
  %s0 = inlined_call_operand.vmem [shape: bf16[64,16], index: 0, kind: input, shape index: {}]
  %s1 = inlined_call_operand.vmem [shape: bf16[16,256], index: 1, kind: input, shape index: {}]
  %s2 = inlined_call_operand.vmem [shape: f32[1,256], index: 2, kind: input, shape index: {}]
  %s3 = inlined_call_operand.hbm [shape: f32[64,256], index: 3, kind: input, shape index: {}]
  %s4 = inlined_call_operand.vmem [shape: bf16[64,256], index: 4, kind: input, shape index: {}]
  %s5 = inlined_call_operand.vmem [shape: f32[1,256], index: 5, kind: input, shape index: {}]
  %s6 = inlined_call_operand.hbm [shape: f32[64,256], index: 6, kind: input, shape index: {}]
  %s7 = inlined_call_operand.vmem [shape: f32[64,4], index: 7, kind: input, shape index: {}]
  %s8 = inlined_call_operand.vmem [shape: f32[1,4], index: 8, kind: input, shape index: {}]
  %s9 = inlined_call_operand.vmem [shape: f32[8,4], index: 9, kind: output, shape index: {}]
  %s10 = sld [smem:[#allocation0]]
  $region54: #{lstm_block_forward.1} parent=0
    _
  %s12 = ssub.s32 1, %s10
  %s13 = scalar_select 0, %s12, %s10
  $region1: #{lstm_block_forward.1} parent=0
    #allocation4 [shape = 'u8[65536]{0}', space=vmem, size = 0x10000, scoped, tag = 'input window, operand 3, single buffered']
    #allocation5 [shape = 's32[1]{0}', space=sflag, size = 0x4, scoped, tag = 'scoped memory for lstm_block_forward.1']
    #allocation6 [shape = 'u8[65536]{0}', space=vmem, size = 0x10000, scoped, tag = 'input window, operand 6, single buffered']
    #allocation7 [shape = 's32[1]{0}', space=sflag, size = 0x4, scoped, tag = 'scoped memory for lstm_block_forward.1']
    %14 = vsyncpa [#allocation5], 0
    %15 = vsyncpa [#allocation7], 0
    // Predicated region
    $region2: #{lstm_block_forward.1} parent=1 // pred_check
      _
    $region3: #{lstm_block_forward.1} parent=1 // pred_check_branch
      %17 = sbr.rel (0) target = $region5
    $region4: #{lstm_block_forward.1} parent=1 // pred_region
      _
    $region5: #{lstm_block_forward.1} parent=1 // pred_fallthru
      _
    // Predicated region
    $region6: #{lstm_block_forward.1} parent=1 // pred_check
      _
    $region7: #{lstm_block_forward.1} parent=1 // pred_check_branch
      %19 = sbr.rel (0) target = $region9
    $region8: #{lstm_block_forward.1} parent=1 // pred_region
      _
    $region9: #{lstm_block_forward.1} parent=1 // pred_fallthru
      _
    // Predicated region
    $region10: #{lstm_block_forward.1} parent=1 // pred_check
      _
    $region11: #{lstm_block_forward.1} parent=1 // pred_check_branch
      %21 = sbr.rel (0) target = $region13
    $region12: #{lstm_block_forward.1} parent=1 // pred_region
      _
    $region13: #{lstm_block_forward.1} parent=1 // pred_fallthru
      _
    // Predicated region
    $region14: #{lstm_block_forward.1} parent=1 // pred_check
      _
    $region15: #{lstm_block_forward.1} parent=1 // pred_check_branch
      %23 = sbr.rel (0) target = $region17
    $region16: #{lstm_block_forward.1} parent=1 // pred_region
      %25 = vsyncadd [#allocation5], 0
      %s26 = sshll.u32 %s3, 4
      %s27 = int_to_ptr.hbm [resolvable:$true] %s26
      %s28 = sshll.u32 [#allocation4], 4
      %s29 = int_to_ptr.vmem [resolvable:$true] %s28
      %34 = dma.hbm_to_vmem [thread:$0]  %s27, 2048, %s29, [#allocation5], 256, 256, 16
    $region17: #{lstm_block_forward.1} parent=1 // pred_fallthru
      _
    // Predicated region
    $region18: #{lstm_block_forward.1} parent=1 // pred_check
      _
    $region19: #{lstm_block_forward.1} parent=1 // pred_check_branch
      %36 = sbr.rel (0) target = $region21
    $region20: #{lstm_block_forward.1} parent=1 // pred_region
      _
    $region21: #{lstm_block_forward.1} parent=1 // pred_fallthru
      _
    // Predicated region
    $region22: #{lstm_block_forward.1} parent=1 // pred_check
      _
    $region23: #{lstm_block_forward.1} parent=1 // pred_check_branch
      %38 = sbr.rel (0) target = $region25
    $region24: #{lstm_block_forward.1} parent=1 // pred_region
      _
    $region25: #{lstm_block_forward.1} parent=1 // pred_fallthru
      _
    // Predicated region
    $region26: #{lstm_block_forward.1} parent=1 // pred_check
      _
    $region27: #{lstm_block_forward.1} parent=1 // pred_check_branch
      %40 = sbr.rel (0) target = $region29
    $region28: #{lstm_block_forward.1} parent=1 // pred_region
      %42 = vsyncadd [#allocation7], 0
      %s43 = sshll.u32 %s6, 4
      %s44 = int_to_ptr.hbm [resolvable:$true] %s43
      %s45 = sshll.u32 [#allocation6], 4
      %s46 = int_to_ptr.vmem [resolvable:$true] %s45
      %51 = dma.hbm_to_vmem [thread:$0]  %s44, 2048, %s46, [#allocation7], 256, 256, 16
    $region29: #{lstm_block_forward.1} parent=1 // pred_fallthru
      _
    // Predicated region
    $region30: #{lstm_block_forward.1} parent=1 // pred_check
      _
    $region31: #{lstm_block_forward.1} parent=1 // pred_check_branch
      %53 = sbr.rel (0) target = $region33
    $region32: #{lstm_block_forward.1} parent=1 // pred_region
      _
    $region33: #{lstm_block_forward.1} parent=1 // pred_fallthru
      _
    // Predicated region
    $region34: #{lstm_block_forward.1} parent=1 // pred_check
      _
    $region35: #{lstm_block_forward.1} parent=1 // pred_check_branch
      %55 = sbr.rel (0) target = $region37
    $region36: #{lstm_block_forward.1} parent=1 // pred_region
      _
    $region37: #{lstm_block_forward.1} parent=1 // pred_fallthru
      _
    // Predicated region
    $region38: #{lstm_block_forward.1} parent=1 // pred_check
      _
    $region39: #{lstm_block_forward.1} parent=1 // pred_check_branch
      %57 = sbr.rel (0) target = $region41
    $region40: #{lstm_block_forward.1} parent=1 // pred_region
      %59 = dma.done [#allocation5], 2048
    $region41: #{lstm_block_forward.1} parent=1 // pred_fallthru
      _
    // Predicated region
    $region42: #{lstm_block_forward.1} parent=1 // pred_check
      _
    $region43: #{lstm_block_forward.1} parent=1 // pred_check_branch
      %61 = sbr.rel (0) target = $region45
    $region44: #{lstm_block_forward.1} parent=1 // pred_region
      %63 = dma.done [#allocation7], 2048
    $region45: #{lstm_block_forward.1} parent=1 // pred_fallthru
      _
    %v65 = vld [vmem:[%s0] sm:$0xf]
    %v66 = vld [vmem:[%s0 + $0x4] sm:$0xf]
    %v67 = vld [vmem:[%s0 + $0x8] sm:$0xf]
    %v68 = vld [vmem:[%s0 + $0xc] sm:$0xf]
    %v69 = vld [vmem:[%s0 + $0x10] sm:$0xf]
    %v70 = vld [vmem:[%s0 + $0x14] sm:$0xf]
    %v71 = vld [vmem:[%s0 + $0x18] sm:$0xf]
    %v72 = vld [vmem:[%s0 + $0x1c] sm:$0xf]
    %v73 = vld [vmem:[%s1] sm:$0xff]
    %v74 = vld [vmem:[%s1 + $0x8] sm:$0xff]
    %v75 = vld [vmem:[%s2] sm:$0x3]
    %v77 = vperm.slane %v75, 0
    %v78 = vperm.slane %v75, 1
    %v89 = vunpack.c.l.b16 %v65
    %v90 = vunpack.c.l.b16 %v66
    %v91 = vunpack.c.l.b16 %v67
    %v92 = vunpack.c.l.b16 %v68
    %v93 = vunpack.c.l.b16 %v69
    %v94 = vunpack.c.l.b16 %v70
    %v95 = vunpack.c.l.b16 %v71
    %v96 = vunpack.c.l.b16 %v72
    %v97 = vpack.c.b16 %v90, %v89
    %v98 = vpack.c.b16 %v92, %v91
    %v99 = vpack.c.b16 %v94, %v93
    %v100 = vpack.c.b16 %v96, %v95
    %v103 = vunpack.c.l.b16 %v73
    %v104 = vunpack.c.h.b16 %v73
    %v105 = vunpack.c.l.b16 %v74
    %v106 = vunpack.c.h.b16 %v74
    %v107 = vpack.c.b16 %v105, %v103
    %v108 = vpack.c.b16 %v106, %v104
    %vm111 = vcmask 130048
    %v113 = vsel %vm111, %v97, 0
    %v116 = vsel %vm111, %v98, 0
    %v119 = vsel %vm111, %v99, 0
    %v122 = vsel %vm111, %v100, 0
    %124 = vmatpush.bf16.msra.mxu0 0
    %125 = vmatpush.bf16.msra.mxu0 0
    %126 = vmatpush.bf16.msra.mxu0 0
    %127 = vmatpush.bf16.msra.mxu0 0
    %128 = vmatpush.bf16.msra.mxu0 0
    %129 = vmatpush.bf16.msra.mxu0 0
    %130 = vmatpush.bf16.msra.mxu0 0
    %131 = vmatpush.bf16.msra.mxu0 %v107
    %132 = vmatmul.bf16.gmra.mxu0 %v113
    %v133 = vpop.f32.mrf.mxu0
    %v134 = vadd.f32 %v77, %v133
    %v135 = vpop.f32.mrf.mxu0
    %v136 = vadd.f32 %v77, %v135
    %137 = vmatmul.bf16.gmra.mxu0 %v116
    %v138 = vpop.f32.mrf.mxu0
    %v139 = vadd.f32 %v77, %v138
    %v140 = vpop.f32.mrf.mxu0
    %v141 = vadd.f32 %v77, %v140
    %142 = vmatmul.bf16.gmra.mxu0 %v119
    %v143 = vpop.f32.mrf.mxu0
    %v144 = vadd.f32 %v77, %v143
    %v145 = vpop.f32.mrf.mxu0
    %v146 = vadd.f32 %v77, %v145
    %147 = vmatmul.bf16.gmra.mxu0 %v122
    %v148 = vpop.f32.mrf.mxu0
    %v149 = vadd.f32 %v77, %v148
    %v150 = vpop.f32.mrf.mxu0
    %v151 = vadd.f32 %v77, %v150
    %152 = vdwg.mxu0
    %153 = vmatpush.bf16.msra.mxu0 0
    %154 = vmatpush.bf16.msra.mxu0 0
    %155 = vmatpush.bf16.msra.mxu0 0
    %156 = vmatpush.bf16.msra.mxu0 0
    %157 = vmatpush.bf16.msra.mxu0 0
    %158 = vmatpush.bf16.msra.mxu0 0
    %159 = vmatpush.bf16.msra.mxu0 0
    %160 = vmatpush.bf16.msra.mxu0 %v108
    %161 = vmatmul.bf16.gmra.mxu0 %v113
    %v162 = vpop.f32.mrf.mxu0
    %v163 = vadd.f32 %v78, %v162
    %v164 = vpop.f32.mrf.mxu0
    %v165 = vadd.f32 %v78, %v164
    %166 = vmatmul.bf16.gmra.mxu0 %v116
    %v167 = vpop.f32.mrf.mxu0
    %v168 = vadd.f32 %v78, %v167
    %v169 = vpop.f32.mrf.mxu0
    %v170 = vadd.f32 %v78, %v169
    %171 = vmatmul.bf16.gmra.mxu0 %v119
    %v172 = vpop.f32.mrf.mxu0
    %v173 = vadd.f32 %v78, %v172
    %v174 = vpop.f32.mrf.mxu0
    %v175 = vadd.f32 %v78, %v174
    %176 = vmatmul.bf16.gmra.mxu0 %v122
    %v177 = vpop.f32.mrf.mxu0
    %v178 = vadd.f32 %v78, %v177
    %v179 = vpop.f32.mrf.mxu0
    %v180 = vadd.f32 %v78, %v179
    %181 = vdwg.mxu0
    %182 = vst [vmem:[#allocation3] sm:$0xff] %v134
    %183 = vst [vmem:[#allocation3 + $0x8] sm:$0xff] %v163
    %184 = vst [vmem:[#allocation3 + $0x10] sm:$0xff] %v136
    %185 = vst [vmem:[#allocation3 + $0x18] sm:$0xff] %v165
    %186 = vst [vmem:[#allocation3 + $0x20] sm:$0xff] %v139
    %187 = vst [vmem:[#allocation3 + $0x28] sm:$0xff] %v168
    %188 = vst [vmem:[#allocation3 + $0x30] sm:$0xff] %v141
    %189 = vst [vmem:[#allocation3 + $0x38] sm:$0xff] %v170
    %190 = vst [vmem:[#allocation3 + $0x40] sm:$0xff] %v144
    %191 = vst [vmem:[#allocation3 + $0x48] sm:$0xff] %v173
    %192 = vst [vmem:[#allocation3 + $0x50] sm:$0xff] %v146
    %193 = vst [vmem:[#allocation3 + $0x58] sm:$0xff] %v175
    %194 = vst [vmem:[#allocation3 + $0x60] sm:$0xff] %v149
    %195 = vst [vmem:[#allocation3 + $0x68] sm:$0xff] %v178
    %196 = vst [vmem:[#allocation3 + $0x70] sm:$0xff] %v151
    %197 = vst [vmem:[#allocation3 + $0x78] sm:$0xff] %v180
    %v198 = vld [vmem:[#allocation3] sm:$0xff]
    %v199 = vld [vmem:[#allocation3 + $0x78] sm:$0xff]
    %v200 = vxor.u32 %v198, 2147483648
    %v201 = vmul.f32 %v200, 1.442695
    %v202 = vpow.pop %v201
    %v203 = vadd.f32 %v202, 1.0
    %v204 = vrcp.pop %v203
    %v205 = vmul.f32 %v203, %v204
    %v206 = vsub.f32 1.0, %v205
    %v207 = vmul.f32 %v204, %v206
    %v208 = vadd.f32 %v204, %v207
    %vm209 = vweird.f32 %v203
    %vm210 = vweird.f32 %v204
    %vm211 = vmor %vm209, %vm210
    %v212 = vsel %vm211, %v204, %v208
    %v213 = vand.u32 2147483647, %v203
    %vm214 = vcmp.eq.f32.partialorder %v213, 8.507059e+37
    %v215 = vand.u32 %v203, 2147483648
    %v216 = vor.u32 1.1754944e-38, %v215
    %v217 = vsel %vm214, %v216, %v212
    %v218 = vmul.f32 1.0, %v217
    %v219 = vtanh.pop %v198
    %v220 = vmul.f32 %v218, 0.0
    %222 = vrot.lane.b32.xlu0 %v219, 64
    %v223 = vpop.permute.xlu0 %222
    %v225 = vmul.f32 %v218, %v223
    %227 = vrot.lane.b32.xlu0 %v225, 32
    %v228 = vpop.permute.xlu0 %227
    %v230 = vadd.f32 %v220, %v228
    %v231 = vtanh.pop %v230
    %233 = vrot.lane.b32.xlu0 %v231, 64
    %v234 = vpop.permute.xlu0 %233
    %v236 = vmul.f32 %v218, %v234
    %v237 = vxor.u32 %v199, 2147483648
    %v238 = vmul.f32 %v237, 1.442695
    %v239 = vpow.pop %v238
    %v240 = vadd.f32 %v239, 1.0
    %v241 = vrcp.pop %v240
    %v242 = vmul.f32 %v240, %v241
    %v243 = vsub.f32 1.0, %v242
    %v244 = vmul.f32 %v241, %v243
    %v245 = vadd.f32 %v241, %v244
    %vm246 = vweird.f32 %v240
    %vm247 = vweird.f32 %v241
    %vm248 = vmor %vm246, %vm247
    %v249 = vsel %vm248, %v241, %v245
    %v250 = vand.u32 2147483647, %v240
    %vm251 = vcmp.eq.f32.partialorder %v250, 8.507059e+37
    %v252 = vand.u32 %v240, 2147483648
    %v253 = vor.u32 1.1754944e-38, %v252
    %v254 = vsel %vm251, %v253, %v249
    %v255 = vmul.f32 1.0, %v254
    %v256 = vtanh.pop %v199
    %v257 = vmul.f32 %v255, 0.0
    %259 = vrot.lane.b32.xlu0 %v256, 64
    %v260 = vpop.permute.xlu0 %259
    %v262 = vmul.f32 %v255, %v260
    %264 = vrot.lane.b32.xlu0 %v262, 32
    %v265 = vpop.permute.xlu0 %264
    %v267 = vadd.f32 %v257, %v265
    %v268 = vtanh.pop %v267
    %270 = vrot.lane.b32.xlu0 %v268, 64
    %v271 = vpop.permute.xlu0 %270
    %v273 = vmul.f32 %v255, %v271
    %275 = vrot.lane.b32.xlu0 %v236, 32
    %v276 = vpop.permute.xlu0 %275
    %vm278 = vcmask 261120
    %279 = vst.msk [vmem:[#allocation2] sm:$0xff] %vm278, %v276
    %281 = vrot.lane.b32.xlu0 %v273, 64
    %v282 = vpop.permute.xlu0 %281
    %vm284 = vcmask 523520
    %285 = vst.msk [vmem:[#allocation2 + $0x38] sm:$0xff] %vm284, %v282
    %v286 = vld [vmem:[#allocation3 + $0x10] sm:$0xff]
    %v287 = vld [vmem:[#allocation3 + $0x68] sm:$0xff]
    %v288 = vsel %vm278, %v276, %v282
    %v289 = vld [vmem:[#allocation4] sm:$0xff]
    %v290 = vld [vmem:[#allocation4 + $0x8] sm:$0xff]
    %v291 = vld [vmem:[#allocation4 + $0x10] sm:$0xff]
    %v292 = vld [vmem:[#allocation4 + $0x18] sm:$0xff]
    %v293 = vld [vmem:[#allocation4 + $0x20] sm:$0xff]
    %v294 = vld [vmem:[#allocation4 + $0x28] sm:$0xff]
    %v295 = vld [vmem:[#allocation4 + $0x30] sm:$0xff]
    %v296 = vld [vmem:[#allocation4 + $0x38] sm:$0xff]
    %v297 = vld [vmem:[#allocation4 + $0x40] sm:$0xff]
    %v298 = vld [vmem:[#allocation4 + $0x48] sm:$0xff]
    %v299 = vld [vmem:[#allocation4 + $0x50] sm:$0xff]
    %v300 = vld [vmem:[#allocation4 + $0x58] sm:$0xff]
    %v301 = vld [vmem:[#allocation4 + $0x60] sm:$0xff]
    %v302 = vld [vmem:[#allocation4 + $0x68] sm:$0xff]
    %v303 = vld [vmem:[#allocation4 + $0x70] sm:$0xff]
    %v304 = vld [vmem:[#allocation4 + $0x78] sm:$0xff]
    %vm305 = vcmask 523264
    %v307 = vsel %vm305, %v288, 0
    %309 = vmatpush.msra.mxu0 0.0
    %310 = vmatpush.msra.mxu0 0.0
    %311 = vmatpush.msra.mxu0 0.0
    %312 = vmatpush.msra.mxu0 0.0
    %313 = vmatpush.msra.mxu0 0.0
    %314 = vmatpush.msra.mxu0 0.0
    %315 = vmatpush.msra.mxu0 0.0
    %316 = vmatpush.msra.mxu0 0.0
    %317 = vmatpush.msra.mxu0 %v303
    %318 = vmatpush.msra.mxu0 %v301
    %319 = vmatpush.msra.mxu0 %v299
    %320 = vmatpush.msra.mxu0 %v297
    %321 = vmatpush.msra.mxu0 %v295
    %322 = vmatpush.msra.mxu0 %v293
    %323 = vmatpush.msra.mxu0 %v291
    %324 = vmatpush.msra.mxu0 %v289
    %325 = vmatmul.f32.gmra.mxu0 %v307
    %v326 = vpop.f32.mrf.mxu0
    %v327 = vadd.f32 0.0, %v326
    %328 = vdwg.mxu0
    %329 = vmatpush.msra.mxu0 0.0
    %330 = vmatpush.msra.mxu0 0.0
    %331 = vmatpush.msra.mxu0 0.0
    %332 = vmatpush.msra.mxu0 0.0
    %333 = vmatpush.msra.mxu0 0.0
    %334 = vmatpush.msra.mxu0 0.0
    %335 = vmatpush.msra.mxu0 0.0
    %336 = vmatpush.msra.mxu0 0.0
    %337 = vmatpush.msra.mxu0 %v304
    %338 = vmatpush.msra.mxu0 %v302
    %339 = vmatpush.msra.mxu0 %v300
    %340 = vmatpush.msra.mxu0 %v298
    %341 = vmatpush.msra.mxu0 %v296
    %342 = vmatpush.msra.mxu0 %v294
    %343 = vmatpush.msra.mxu0 %v292
    %344 = vmatpush.msra.mxu0 %v290
    %345 = vmatmul.f32.gmra.mxu0 %v307
    %v346 = vpop.f32.mrf.mxu0
    %v347 = vadd.f32 0.0, %v346
    %348 = vdwg.mxu0
    %v349 = vadd.f32 %v286, %v327
    %v350 = vadd.f32 %v287, %v347
    %v351 = vxor.u32 %v349, 2147483648
    %v352 = vmul.f32 %v351, 1.442695
    %v353 = vpow.pop %v352
    %v354 = vadd.f32 %v353, 1.0
    %v355 = vrcp.pop %v354
    %v356 = vmul.f32 %v354, %v355
    %v357 = vsub.f32 1.0, %v356
    %v358 = vmul.f32 %v355, %v357
    %v359 = vadd.f32 %v355, %v358
    %vm360 = vweird.f32 %v354
    %vm361 = vweird.f32 %v355
    %vm362 = vmor %vm360, %vm361
    %v363 = vsel %vm362, %v355, %v359
    %v364 = vand.u32 2147483647, %v354
    %vm365 = vcmp.eq.f32.partialorder %v364, 8.507059e+37
    %v366 = vand.u32 %v354, 2147483648
    %v367 = vor.u32 1.1754944e-38, %v366
    %v368 = vsel %vm365, %v367, %v363
    %v369 = vmul.f32 1.0, %v368
    %v370 = vtanh.pop %v349
    %v371 = vmul.f32 %v369, %v230
    %373 = vrot.lane.b32.xlu0 %v370, 64
    %v374 = vpop.permute.xlu0 %373
    %v376 = vmul.f32 %v369, %v374
    %378 = vrot.lane.b32.xlu0 %v376, 32
    %v379 = vpop.permute.xlu0 %378
    %v381 = vadd.f32 %v371, %v379
    %v382 = vtanh.pop %v381
    %384 = vrot.lane.b32.xlu0 %v382, 64
    %v385 = vpop.permute.xlu0 %384
    %v387 = vmul.f32 %v369, %v385
    %v388 = vxor.u32 %v350, 2147483648
    %v389 = vmul.f32 %v388, 1.442695
    %v390 = vpow.pop %v389
    %v391 = vadd.f32 %v390, 1.0
    %v392 = vrcp.pop %v391
    %v393 = vmul.f32 %v391, %v392
    %v394 = vsub.f32 1.0, %v393
    %v395 = vmul.f32 %v392, %v394
    %v396 = vadd.f32 %v392, %v395
    %vm397 = vweird.f32 %v391
    %vm398 = vweird.f32 %v392
    %vm399 = vmor %vm397, %vm398
    %v400 = vsel %vm399, %v392, %v396
    %v401 = vand.u32 2147483647, %v391
    %vm402 = vcmp.eq.f32.partialorder %v401, 8.507059e+37
    %v403 = vand.u32 %v391, 2147483648
    %v404 = vor.u32 1.1754944e-38, %v403
    %v405 = vsel %vm402, %v404, %v400
    %v406 = vmul.f32 1.0, %v405
    %v407 = vtanh.pop %v350
    %v408 = vmul.f32 %v406, %v267
    %410 = vrot.lane.b32.xlu0 %v407, 64
    %v411 = vpop.permute.xlu0 %410
    %v413 = vmul.f32 %v406, %v411
    %415 = vrot.lane.b32.xlu0 %v413, 32
    %v416 = vpop.permute.xlu0 %415
    %v418 = vadd.f32 %v408, %v416
    %v419 = vtanh.pop %v418
    %421 = vrot.lane.b32.xlu0 %v419, 64
    %v422 = vpop.permute.xlu0 %421
    %v424 = vmul.f32 %v406, %v422
    %426 = vrot.lane.b32.xlu0 %v387, 32
    %v427 = vpop.permute.xlu0 %426
    %429 = vst.msk [vmem:[#allocation2 + $0x8] sm:$0xff] %vm278, %v427
    %431 = vrot.lane.b32.xlu0 %v424, 64
    %v432 = vpop.permute.xlu0 %431
    %434 = vst.msk [vmem:[#allocation2 + $0x30] sm:$0xff] %vm284, %v432
    %v435 = vld [vmem:[#allocation3 + $0x20] sm:$0xff]
    %v436 = vld [vmem:[#allocation3 + $0x58] sm:$0xff]
    %v437 = vsel %vm278, %v427, %v432
    %v438 = vld [vmem:[#allocation4] sm:$0xff]
    %v439 = vld [vmem:[#allocation4 + $0x8] sm:$0xff]
    %v440 = vld [vmem:[#allocation4 + $0x10] sm:$0xff]
    %v441 = vld [vmem:[#allocation4 + $0x18] sm:$0xff]
    %v442 = vld [vmem:[#allocation4 + $0x20] sm:$0xff]
    %v443 = vld [vmem:[#allocation4 + $0x28] sm:$0xff]
    %v444 = vld [vmem:[#allocation4 + $0x30] sm:$0xff]
    %v445 = vld [vmem:[#allocation4 + $0x38] sm:$0xff]
    %v446 = vld [vmem:[#allocation4 + $0x40] sm:$0xff]
    %v447 = vld [vmem:[#allocation4 + $0x48] sm:$0xff]
    %v448 = vld [vmem:[#allocation4 + $0x50] sm:$0xff]
    %v449 = vld [vmem:[#allocation4 + $0x58] sm:$0xff]
    %v450 = vld [vmem:[#allocation4 + $0x60] sm:$0xff]
    %v451 = vld [vmem:[#allocation4 + $0x68] sm:$0xff]
    %v452 = vld [vmem:[#allocation4 + $0x70] sm:$0xff]
    %v453 = vld [vmem:[#allocation4 + $0x78] sm:$0xff]
    %v455 = vsel %vm305, %v437, 0
    %457 = vmatpush.msra.mxu0 0.0
    %458 = vmatpush.msra.mxu0 0.0
    %459 = vmatpush.msra.mxu0 0.0
    %460 = vmatpush.msra.mxu0 0.0
    %461 = vmatpush.msra.mxu0 0.0
    %462 = vmatpush.msra.mxu0 0.0
    %463 = vmatpush.msra.mxu0 0.0
    %464 = vmatpush.msra.mxu0 0.0
    %465 = vmatpush.msra.mxu0 %v452
    %466 = vmatpush.msra.mxu0 %v450
    %467 = vmatpush.msra.mxu0 %v448
    %468 = vmatpush.msra.mxu0 %v446
    %469 = vmatpush.msra.mxu0 %v444
    %470 = vmatpush.msra.mxu0 %v442
    %471 = vmatpush.msra.mxu0 %v440
    %472 = vmatpush.msra.mxu0 %v438
    %473 = vmatmul.f32.gmra.mxu0 %v455
    %v474 = vpop.f32.mrf.mxu0
    %v475 = vadd.f32 0.0, %v474
    %476 = vdwg.mxu0
    %477 = vmatpush.msra.mxu0 0.0
    %478 = vmatpush.msra.mxu0 0.0
    %479 = vmatpush.msra.mxu0 0.0
    %480 = vmatpush.msra.mxu0 0.0
    %481 = vmatpush.msra.mxu0 0.0
    %482 = vmatpush.msra.mxu0 0.0
    %483 = vmatpush.msra.mxu0 0.0
    %484 = vmatpush.msra.mxu0 0.0
    %485 = vmatpush.msra.mxu0 %v453
    %486 = vmatpush.msra.mxu0 %v451
    %487 = vmatpush.msra.mxu0 %v449
    %488 = vmatpush.msra.mxu0 %v447
    %489 = vmatpush.msra.mxu0 %v445
    %490 = vmatpush.msra.mxu0 %v443
    %491 = vmatpush.msra.mxu0 %v441
    %492 = vmatpush.msra.mxu0 %v439
    %493 = vmatmul.f32.gmra.mxu0 %v455
    %v494 = vpop.f32.mrf.mxu0
    %v495 = vadd.f32 0.0, %v494
    %496 = vdwg.mxu0
    %v497 = vadd.f32 %v435, %v475
    %v498 = vadd.f32 %v436, %v495
    %v499 = vxor.u32 %v497, 2147483648
    %v500 = vmul.f32 %v499, 1.442695
    %v501 = vpow.pop %v500
    %v502 = vadd.f32 %v501, 1.0
    %v503 = vrcp.pop %v502
    %v504 = vmul.f32 %v502, %v503
    %v505 = vsub.f32 1.0, %v504
    %v506 = vmul.f32 %v503, %v505
    %v507 = vadd.f32 %v503, %v506
    %vm508 = vweird.f32 %v502
    %vm509 = vweird.f32 %v503
    %vm510 = vmor %vm508, %vm509
    %v511 = vsel %vm510, %v503, %v507
    %v512 = vand.u32 2147483647, %v502
    %vm513 = vcmp.eq.f32.partialorder %v512, 8.507059e+37
    %v514 = vand.u32 %v502, 2147483648
    %v515 = vor.u32 1.1754944e-38, %v514
    %v516 = vsel %vm513, %v515, %v511
    %v517 = vmul.f32 1.0, %v516
    %v518 = vtanh.pop %v497
    %v519 = vmul.f32 %v517, %v381
    %521 = vrot.lane.b32.xlu0 %v518, 64
    %v522 = vpop.permute.xlu0 %521
    %v524 = vmul.f32 %v517, %v522
    %526 = vrot.lane.b32.xlu0 %v524, 32
    %v527 = vpop.permute.xlu0 %526
    %v529 = vadd.f32 %v519, %v527
    %v530 = vtanh.pop %v529
    %532 = vrot.lane.b32.xlu0 %v530, 64
    %v533 = vpop.permute.xlu0 %532
    %v535 = vmul.f32 %v517, %v533
    %v536 = vxor.u32 %v498, 2147483648
    %v537 = vmul.f32 %v536, 1.442695
    %v538 = vpow.pop %v537
    %v539 = vadd.f32 %v538, 1.0
    %v540 = vrcp.pop %v539
    %v541 = vmul.f32 %v539, %v540
    %v542 = vsub.f32 1.0, %v541
    %v543 = vmul.f32 %v540, %v542
    %v544 = vadd.f32 %v540, %v543
    %vm545 = vweird.f32 %v539
    %vm546 = vweird.f32 %v540
    %vm547 = vmor %vm545, %vm546
    %v548 = vsel %vm547, %v540, %v544
    %v549 = vand.u32 2147483647, %v539
    %vm550 = vcmp.eq.f32.partialorder %v549, 8.507059e+37
    %v551 = vand.u32 %v539, 2147483648
    %v552 = vor.u32 1.1754944e-38, %v551
    %v553 = vsel %vm550, %v552, %v548
    %v554 = vmul.f32 1.0, %v553
    %v555 = vtanh.pop %v498
    %v556 = vmul.f32 %v554, %v418
    %558 = vrot.lane.b32.xlu0 %v555, 64
    %v559 = vpop.permute.xlu0 %558
    %v561 = vmul.f32 %v554, %v559
    %563 = vrot.lane.b32.xlu0 %v561, 32
    %v564 = vpop.permute.xlu0 %563
    %v566 = vadd.f32 %v556, %v564
    %v567 = vtanh.pop %v566
    %569 = vrot.lane.b32.xlu0 %v567, 64
    %v570 = vpop.permute.xlu0 %569
    %v572 = vmul.f32 %v554, %v570
    %574 = vrot.lane.b32.xlu0 %v535, 32
    %v575 = vpop.permute.xlu0 %574
    %577 = vst.msk [vmem:[#allocation2 + $0x10] sm:$0xff] %vm278, %v575
    %579 = vrot.lane.b32.xlu0 %v572, 64
    %v580 = vpop.permute.xlu0 %579
    %582 = vst.msk [vmem:[#allocation2 + $0x28] sm:$0xff] %vm284, %v580
    %v583 = vld [vmem:[#allocation3 + $0x30] sm:$0xff]
    %v584 = vld [vmem:[#allocation3 + $0x48] sm:$0xff]
    %v585 = vsel %vm278, %v575, %v580
    %v586 = vld [vmem:[#allocation4] sm:$0xff]
    %v587 = vld [vmem:[#allocation4 + $0x8] sm:$0xff]
    %v588 = vld [vmem:[#allocation4 + $0x10] sm:$0xff]
    %v589 = vld [vmem:[#allocation4 + $0x18] sm:$0xff]
    %v590 = vld [vmem:[#allocation4 + $0x20] sm:$0xff]
    %v591 = vld [vmem:[#allocation4 + $0x28] sm:$0xff]
    %v592 = vld [vmem:[#allocation4 + $0x30] sm:$0xff]
    %v593 = vld [vmem:[#allocation4 + $0x38] sm:$0xff]
    %v594 = vld [vmem:[#allocation4 + $0x40] sm:$0xff]
    %v595 = vld [vmem:[#allocation4 + $0x48] sm:$0xff]
    %v596 = vld [vmem:[#allocation4 + $0x50] sm:$0xff]
    %v597 = vld [vmem:[#allocation4 + $0x58] sm:$0xff]
    %v598 = vld [vmem:[#allocation4 + $0x60] sm:$0xff]
    %v599 = vld [vmem:[#allocation4 + $0x68] sm:$0xff]
    %v600 = vld [vmem:[#allocation4 + $0x70] sm:$0xff]
    %v601 = vld [vmem:[#allocation4 + $0x78] sm:$0xff]
    %v603 = vsel %vm305, %v585, 0
    %605 = vmatpush.msra.mxu0 0.0
    %606 = vmatpush.msra.mxu0 0.0
    %607 = vmatpush.msra.mxu0 0.0
    %608 = vmatpush.msra.mxu0 0.0
    %609 = vmatpush.msra.mxu0 0.0
    %610 = vmatpush.msra.mxu0 0.0
    %611 = vmatpush.msra.mxu0 0.0
    %612 = vmatpush.msra.mxu0 0.0
    %613 = vmatpush.msra.mxu0 %v600
    %614 = vmatpush.msra.mxu0 %v598
    %615 = vmatpush.msra.mxu0 %v596
    %616 = vmatpush.msra.mxu0 %v594
    %617 = vmatpush.msra.mxu0 %v592
    %618 = vmatpush.msra.mxu0 %v590
    %619 = vmatpush.msra.mxu0 %v588
    %620 = vmatpush.msra.mxu0 %v586
    %621 = vmatmul.f32.gmra.mxu0 %v603
    %v622 = vpop.f32.mrf.mxu0
    %v623 = vadd.f32 0.0, %v622
    %624 = vdwg.mxu0
    %625 = vmatpush.msra.mxu0 0.0
    %626 = vmatpush.msra.mxu0 0.0
    %627 = vmatpush.msra.mxu0 0.0
    %628 = vmatpush.msra.mxu0 0.0
    %629 = vmatpush.msra.mxu0 0.0
    %630 = vmatpush.msra.mxu0 0.0
    %631 = vmatpush.msra.mxu0 0.0
    %632 = vmatpush.msra.mxu0 0.0
    %633 = vmatpush.msra.mxu0 %v601
    %634 = vmatpush.msra.mxu0 %v599
    %635 = vmatpush.msra.mxu0 %v597
    %636 = vmatpush.msra.mxu0 %v595
    %637 = vmatpush.msra.mxu0 %v593
    %638 = vmatpush.msra.mxu0 %v591
    %639 = vmatpush.msra.mxu0 %v589
    %640 = vmatpush.msra.mxu0 %v587
    %641 = vmatmul.f32.gmra.mxu0 %v603
    %v642 = vpop.f32.mrf.mxu0
    %v643 = vadd.f32 0.0, %v642
    %644 = vdwg.mxu0
    %v645 = vadd.f32 %v583, %v623
    %v646 = vadd.f32 %v584, %v643
    %v647 = vxor.u32 %v645, 2147483648
    %v648 = vmul.f32 %v647, 1.442695
    %v649 = vpow.pop %v648
    %v650 = vadd.f32 %v649, 1.0
    %v651 = vrcp.pop %v650
    %v652 = vmul.f32 %v650, %v651
    %v653 = vsub.f32 1.0, %v652
    %v654 = vmul.f32 %v651, %v653
    %v655 = vadd.f32 %v651, %v654
    %vm656 = vweird.f32 %v650
    %vm657 = vweird.f32 %v651
    %vm658 = vmor %vm656, %vm657
    %v659 = vsel %vm658, %v651, %v655
    %v660 = vand.u32 2147483647, %v650
    %vm661 = vcmp.eq.f32.partialorder %v660, 8.507059e+37
    %v662 = vand.u32 %v650, 2147483648
    %v663 = vor.u32 1.1754944e-38, %v662
    %v664 = vsel %vm661, %v663, %v659
    %v665 = vmul.f32 1.0, %v664
    %v666 = vtanh.pop %v645
    %v667 = vmul.f32 %v665, %v529
    %669 = vrot.lane.b32.xlu0 %v666, 64
    %v670 = vpop.permute.xlu0 %669
    %v672 = vmul.f32 %v665, %v670
    %674 = vrot.lane.b32.xlu0 %v672, 32
    %v675 = vpop.permute.xlu0 %674
    %v677 = vadd.f32 %v667, %v675
    %v678 = vtanh.pop %v677
    %680 = vrot.lane.b32.xlu0 %v678, 64
    %v681 = vpop.permute.xlu0 %680
    %v683 = vmul.f32 %v665, %v681
    %v684 = vxor.u32 %v646, 2147483648
    %v685 = vmul.f32 %v684, 1.442695
    %v686 = vpow.pop %v685
    %v687 = vadd.f32 %v686, 1.0
    %v688 = vrcp.pop %v687
    %v689 = vmul.f32 %v687, %v688
    %v690 = vsub.f32 1.0, %v689
    %v691 = vmul.f32 %v688, %v690
    %v692 = vadd.f32 %v688, %v691
    %vm693 = vweird.f32 %v687
    %vm694 = vweird.f32 %v688
    %vm695 = vmor %vm693, %vm694
    %v696 = vsel %vm695, %v688, %v692
    %v697 = vand.u32 2147483647, %v687
    %vm698 = vcmp.eq.f32.partialorder %v697, 8.507059e+37
    %v699 = vand.u32 %v687, 2147483648
    %v700 = vor.u32 1.1754944e-38, %v699
    %v701 = vsel %vm698, %v700, %v696
    %v702 = vmul.f32 1.0, %v701
    %v703 = vtanh.pop %v646
    %v704 = vmul.f32 %v702, %v566
    %706 = vrot.lane.b32.xlu0 %v703, 64
    %v707 = vpop.permute.xlu0 %706
    %v709 = vmul.f32 %v702, %v707
    %711 = vrot.lane.b32.xlu0 %v709, 32
    %v712 = vpop.permute.xlu0 %711
    %v714 = vadd.f32 %v704, %v712
    %v715 = vtanh.pop %v714
    %717 = vrot.lane.b32.xlu0 %v715, 64
    %v718 = vpop.permute.xlu0 %717
    %v720 = vmul.f32 %v702, %v718
    %722 = vrot.lane.b32.xlu0 %v683, 32
    %v723 = vpop.permute.xlu0 %722
    %725 = vst.msk [vmem:[#allocation2 + $0x18] sm:$0xff] %vm278, %v723
    %727 = vrot.lane.b32.xlu0 %v720, 64
    %v728 = vpop.permute.xlu0 %727
    %730 = vst.msk [vmem:[#allocation2 + $0x20] sm:$0xff] %vm284, %v728
    %v731 = vld [vmem:[#allocation3 + $0x40] sm:$0xff]
    %v732 = vld [vmem:[#allocation3 + $0x38] sm:$0xff]
    %v733 = vsel %vm278, %v723, %v728
    %v734 = vld [vmem:[#allocation4] sm:$0xff]
    %v735 = vld [vmem:[#allocation4 + $0x8] sm:$0xff]
    %v736 = vld [vmem:[#allocation4 + $0x10] sm:$0xff]
    %v737 = vld [vmem:[#allocation4 + $0x18] sm:$0xff]
    %v738 = vld [vmem:[#allocation4 + $0x20] sm:$0xff]
    %v739 = vld [vmem:[#allocation4 + $0x28] sm:$0xff]
    %v740 = vld [vmem:[#allocation4 + $0x30] sm:$0xff]
    %v741 = vld [vmem:[#allocation4 + $0x38] sm:$0xff]
    %v742 = vld [vmem:[#allocation4 + $0x40] sm:$0xff]
    %v743 = vld [vmem:[#allocation4 + $0x48] sm:$0xff]
    %v744 = vld [vmem:[#allocation4 + $0x50] sm:$0xff]
    %v745 = vld [vmem:[#allocation4 + $0x58] sm:$0xff]
    %v746 = vld [vmem:[#allocation4 + $0x60] sm:$0xff]
    %v747 = vld [vmem:[#allocation4 + $0x68] sm:$0xff]
    %v748 = vld [vmem:[#allocation4 + $0x70] sm:$0xff]
    %v749 = vld [vmem:[#allocation4 + $0x78] sm:$0xff]
    %v751 = vsel %vm305, %v733, 0
    %753 = vmatpush.msra.mxu0 0.0
    %754 = vmatpush.msra.mxu0 0.0
    %755 = vmatpush.msra.mxu0 0.0
    %756 = vmatpush.msra.mxu0 0.0
    %757 = vmatpush.msra.mxu0 0.0
    %758 = vmatpush.msra.mxu0 0.0
    %759 = vmatpush.msra.mxu0 0.0
    %760 = vmatpush.msra.mxu0 0.0
    %761 = vmatpush.msra.mxu0 %v748
    %762 = vmatpush.msra.mxu0 %v746
    %763 = vmatpush.msra.mxu0 %v744
    %764 = vmatpush.msra.mxu0 %v742
    %765 = vmatpush.msra.mxu0 %v740
    %766 = vmatpush.msra.mxu0 %v738
    %767 = vmatpush.msra.mxu0 %v736
    %768 = vmatpush.msra.mxu0 %v734
    %769 = vmatmul.f32.gmra.mxu0 %v751
    %v770 = vpop.f32.mrf.mxu0
    %v771 = vadd.f32 0.0, %v770
    %772 = vdwg.mxu0
    %773 = vmatpush.msra.mxu0 0.0
    %774 = vmatpush.msra.mxu0 0.0
    %775 = vmatpush.msra.mxu0 0.0
    %776 = vmatpush.msra.mxu0 0.0
    %777 = vmatpush.msra.mxu0 0.0
    %778 = vmatpush.msra.mxu0 0.0
    %779 = vmatpush.msra.mxu0 0.0
    %780 = vmatpush.msra.mxu0 0.0
    %781 = vmatpush.msra.mxu0 %v749
    %782 = vmatpush.msra.mxu0 %v747
    %783 = vmatpush.msra.mxu0 %v745
    %784 = vmatpush.msra.mxu0 %v743
    %785 = vmatpush.msra.mxu0 %v741
    %786 = vmatpush.msra.mxu0 %v739
    %787 = vmatpush.msra.mxu0 %v737
    %788 = vmatpush.msra.mxu0 %v735
    %789 = vmatmul.f32.gmra.mxu0 %v751
    %v790 = vpop.f32.mrf.mxu0
    %v791 = vadd.f32 0.0, %v790
    %792 = vdwg.mxu0
    %v793 = vadd.f32 %v731, %v771
    %v794 = vadd.f32 %v732, %v791
    %v795 = vxor.u32 %v793, 2147483648
    %v796 = vmul.f32 %v795, 1.442695
    %v797 = vpow.pop %v796
    %v798 = vadd.f32 %v797, 1.0
    %v799 = vrcp.pop %v798
    %v800 = vmul.f32 %v798, %v799
    %v801 = vsub.f32 1.0, %v800
    %v802 = vmul.f32 %v799, %v801
    %v803 = vadd.f32 %v799, %v802
    %vm804 = vweird.f32 %v798
    %vm805 = vweird.f32 %v799
    %vm806 = vmor %vm804, %vm805
    %v807 = vsel %vm806, %v799, %v803
    %v808 = vand.u32 2147483647, %v798
    %vm809 = vcmp.eq.f32.partialorder %v808, 8.507059e+37
    %v810 = vand.u32 %v798, 2147483648
    %v811 = vor.u32 1.1754944e-38, %v810
    %v812 = vsel %vm809, %v811, %v807
    %v813 = vmul.f32 1.0, %v812
    %v814 = vtanh.pop %v793
    %v815 = vmul.f32 %v813, %v677
    %817 = vrot.lane.b32.xlu0 %v814, 64
    %v818 = vpop.permute.xlu0 %817
    %v820 = vmul.f32 %v813, %v818
    %822 = vrot.lane.b32.xlu0 %v820, 32
    %v823 = vpop.permute.xlu0 %822
    %v825 = vadd.f32 %v815, %v823
    %v826 = vtanh.pop %v825
    %828 = vrot.lane.b32.xlu0 %v826, 64
    %v829 = vpop.permute.xlu0 %828
    %v831 = vmul.f32 %v813, %v829
    %v832 = vxor.u32 %v794, 2147483648
    %v833 = vmul.f32 %v832, 1.442695
    %v834 = vpow.pop %v833
    %v835 = vadd.f32 %v834, 1.0
    %v836 = vrcp.pop %v835
    %v837 = vmul.f32 %v835, %v836
    %v838 = vsub.f32 1.0, %v837
    %v839 = vmul.f32 %v836, %v838
    %v840 = vadd.f32 %v836, %v839
    %vm841 = vweird.f32 %v835
    %vm842 = vweird.f32 %v836
    %vm843 = vmor %vm841, %vm842
    %v844 = vsel %vm843, %v836, %v840
    %v845 = vand.u32 2147483647, %v835
    %vm846 = vcmp.eq.f32.partialorder %v845, 8.507059e+37
    %v847 = vand.u32 %v835, 2147483648
    %v848 = vor.u32 1.1754944e-38, %v847
    %v849 = vsel %vm846, %v848, %v844
    %v850 = vmul.f32 1.0, %v849
    %v851 = vtanh.pop %v794
    %v852 = vmul.f32 %v850, %v714
    %854 = vrot.lane.b32.xlu0 %v851, 64
    %v855 = vpop.permute.xlu0 %854
    %v857 = vmul.f32 %v850, %v855
    %859 = vrot.lane.b32.xlu0 %v857, 32
    %v860 = vpop.permute.xlu0 %859
    %v862 = vadd.f32 %v852, %v860
    %v863 = vtanh.pop %v862
    %865 = vrot.lane.b32.xlu0 %v863, 64
    %v866 = vpop.permute.xlu0 %865
    %v868 = vmul.f32 %v850, %v866
    %870 = vrot.lane.b32.xlu0 %v831, 32
    %v871 = vpop.permute.xlu0 %870
    %873 = vst.msk [vmem:[#allocation2 + $0x20] sm:$0xff] %vm278, %v871
    %875 = vrot.lane.b32.xlu0 %v868, 64
    %v876 = vpop.permute.xlu0 %875
    %878 = vst.msk [vmem:[#allocation2 + $0x18] sm:$0xff] %vm284, %v876
    %v879 = vld [vmem:[#allocation3 + $0x50] sm:$0xff]
    %v880 = vld [vmem:[#allocation3 + $0x28] sm:$0xff]
    %v881 = vsel %vm278, %v871, %v876
    %v882 = vld [vmem:[#allocation4] sm:$0xff]
    %v883 = vld [vmem:[#allocation4 + $0x8] sm:$0xff]
    %v884 = vld [vmem:[#allocation4 + $0x10] sm:$0xff]
    %v885 = vld [vmem:[#allocation4 + $0x18] sm:$0xff]
    %v886 = vld [vmem:[#allocation4 + $0x20] sm:$0xff]
    %v887 = vld [vmem:[#allocation4 + $0x28] sm:$0xff]
    %v888 = vld [vmem:[#allocation4 + $0x30] sm:$0xff]
    %v889 = vld [vmem:[#allocation4 + $0x38] sm:$0xff]
    %v890 = vld [vmem:[#allocation4 + $0x40] sm:$0xff]
    %v891 = vld [vmem:[#allocation4 + $0x48] sm:$0xff]
    %v892 = vld [vmem:[#allocation4 + $0x50] sm:$0xff]
    %v893 = vld [vmem:[#allocation4 + $0x58] sm:$0xff]
    %v894 = vld [vmem:[#allocation4 + $0x60] sm:$0xff]
    %v895 = vld [vmem:[#allocation4 + $0x68] sm:$0xff]
    %v896 = vld [vmem:[#allocation4 + $0x70] sm:$0xff]
    %v897 = vld [vmem:[#allocation4 + $0x78] sm:$0xff]
    %v899 = vsel %vm305, %v881, 0
    %901 = vmatpush.msra.mxu0 0.0
    %902 = vmatpush.msra.mxu0 0.0
    %903 = vmatpush.msra.mxu0 0.0
    %904 = vmatpush.msra.mxu0 0.0
    %905 = vmatpush.msra.mxu0 0.0
    %906 = vmatpush.msra.mxu0 0.0
    %907 = vmatpush.msra.mxu0 0.0
    %908 = vmatpush.msra.mxu0 0.0
    %909 = vmatpush.msra.mxu0 %v896
    %910 = vmatpush.msra.mxu0 %v894
    %911 = vmatpush.msra.mxu0 %v892
    %912 = vmatpush.msra.mxu0 %v890
    %913 = vmatpush.msra.mxu0 %v888
    %914 = vmatpush.msra.mxu0 %v886
    %915 = vmatpush.msra.mxu0 %v884
    %916 = vmatpush.msra.mxu0 %v882
    %917 = vmatmul.f32.gmra.mxu0 %v899
    %v918 = vpop.f32.mrf.mxu0
    %v919 = vadd.f32 0.0, %v918
    %920 = vdwg.mxu0
    %921 = vmatpush.msra.mxu0 0.0
    %922 = vmatpush.msra.mxu0 0.0
    %923 = vmatpush.msra.mxu0 0.0
    %924 = vmatpush.msra.mxu0 0.0
    %925 = vmatpush.msra.mxu0 0.0
    %926 = vmatpush.msra.mxu0 0.0
    %927 = vmatpush.msra.mxu0 0.0
    %928 = vmatpush.msra.mxu0 0.0
    %929 = vmatpush.msra.mxu0 %v897
    %930 = vmatpush.msra.mxu0 %v895
    %931 = vmatpush.msra.mxu0 %v893
    %932 = vmatpush.msra.mxu0 %v891
    %933 = vmatpush.msra.mxu0 %v889
    %934 = vmatpush.msra.mxu0 %v887
    %935 = vmatpush.msra.mxu0 %v885
    %936 = vmatpush.msra.mxu0 %v883
    %937 = vmatmul.f32.gmra.mxu0 %v899
    %v938 = vpop.f32.mrf.mxu0
    %v939 = vadd.f32 0.0, %v938
    %940 = vdwg.mxu0
    %v941 = vadd.f32 %v879, %v919
    %v942 = vadd.f32 %v880, %v939
    %v943 = vxor.u32 %v941, 2147483648
    %v944 = vmul.f32 %v943, 1.442695
    %v945 = vpow.pop %v944
    %v946 = vadd.f32 %v945, 1.0
    %v947 = vrcp.pop %v946
    %v948 = vmul.f32 %v946, %v947
    %v949 = vsub.f32 1.0, %v948
    %v950 = vmul.f32 %v947, %v949
    %v951 = vadd.f32 %v947, %v950
    %vm952 = vweird.f32 %v946
    %vm953 = vweird.f32 %v947
    %vm954 = vmor %vm952, %vm953
    %v955 = vsel %vm954, %v947, %v951
    %v956 = vand.u32 2147483647, %v946
    %vm957 = vcmp.eq.f32.partialorder %v956, 8.507059e+37
    %v958 = vand.u32 %v946, 2147483648
    %v959 = vor.u32 1.1754944e-38, %v958
    %v960 = vsel %vm957, %v959, %v955
    %v961 = vmul.f32 1.0, %v960
    %v962 = vtanh.pop %v941
    %v963 = vmul.f32 %v961, %v825
    %965 = vrot.lane.b32.xlu0 %v962, 64
    %v966 = vpop.permute.xlu0 %965
    %v968 = vmul.f32 %v961, %v966
    %970 = vrot.lane.b32.xlu0 %v968, 32
    %v971 = vpop.permute.xlu0 %970
    %v973 = vadd.f32 %v963, %v971
    %v974 = vtanh.pop %v973
    %976 = vrot.lane.b32.xlu0 %v974, 64
    %v977 = vpop.permute.xlu0 %976
    %v979 = vmul.f32 %v961, %v977
    %v980 = vxor.u32 %v942, 2147483648
    %v981 = vmul.f32 %v980, 1.442695
    %v982 = vpow.pop %v981
    %v983 = vadd.f32 %v982, 1.0
    %v984 = vrcp.pop %v983
    %v985 = vmul.f32 %v983, %v984
    %v986 = vsub.f32 1.0, %v985
    %v987 = vmul.f32 %v984, %v986
    %v988 = vadd.f32 %v984, %v987
    %vm989 = vweird.f32 %v983
    %vm990 = vweird.f32 %v984
    %vm991 = vmor %vm989, %vm990
    %v992 = vsel %vm991, %v984, %v988
    %v993 = vand.u32 2147483647, %v983
    %vm994 = vcmp.eq.f32.partialorder %v993, 8.507059e+37
    %v995 = vand.u32 %v983, 2147483648
    %v996 = vor.u32 1.1754944e-38, %v995
    %v997 = vsel %vm994, %v996, %v992
    %v998 = vmul.f32 1.0, %v997
    %v999 = vtanh.pop %v942
    %v1000 = vmul.f32 %v998, %v862
    %1002 = vrot.lane.b32.xlu0 %v999, 64
    %v1003 = vpop.permute.xlu0 %1002
    %v1005 = vmul.f32 %v998, %v1003
    %1007 = vrot.lane.b32.xlu0 %v1005, 32
    %v1008 = vpop.permute.xlu0 %1007
    %v1010 = vadd.f32 %v1000, %v1008
    %v1011 = vtanh.pop %v1010
    %1013 = vrot.lane.b32.xlu0 %v1011, 64
    %v1014 = vpop.permute.xlu0 %1013
    %v1016 = vmul.f32 %v998, %v1014
    %1018 = vrot.lane.b32.xlu0 %v979, 32
    %v1019 = vpop.permute.xlu0 %1018
    %1021 = vst.msk [vmem:[#allocation2 + $0x28] sm:$0xff] %vm278, %v1019
    %1023 = vrot.lane.b32.xlu0 %v1016, 64
    %v1024 = vpop.permute.xlu0 %1023
    %1026 = vst.msk [vmem:[#allocation2 + $0x10] sm:$0xff] %vm284, %v1024
    %v1027 = vld [vmem:[#allocation3 + $0x60] sm:$0xff]
    %v1028 = vld [vmem:[#allocation3 + $0x18] sm:$0xff]
    %v1029 = vsel %vm278, %v1019, %v1024
    %v1030 = vld [vmem:[#allocation4] sm:$0xff]
    %v1031 = vld [vmem:[#allocation4 + $0x8] sm:$0xff]
    %v1032 = vld [vmem:[#allocation4 + $0x10] sm:$0xff]
    %v1033 = vld [vmem:[#allocation4 + $0x18] sm:$0xff]
    %v1034 = vld [vmem:[#allocation4 + $0x20] sm:$0xff]
    %v1035 = vld [vmem:[#allocation4 + $0x28] sm:$0xff]
    %v1036 = vld [vmem:[#allocation4 + $0x30] sm:$0xff]
    %v1037 = vld [vmem:[#allocation4 + $0x38] sm:$0xff]
    %v1038 = vld [vmem:[#allocation4 + $0x40] sm:$0xff]
    %v1039 = vld [vmem:[#allocation4 + $0x48] sm:$0xff]
    %v1040 = vld [vmem:[#allocation4 + $0x50] sm:$0xff]
    %v1041 = vld [vmem:[#allocation4 + $0x58] sm:$0xff]
    %v1042 = vld [vmem:[#allocation4 + $0x60] sm:$0xff]
    %v1043 = vld [vmem:[#allocation4 + $0x68] sm:$0xff]
    %v1044 = vld [vmem:[#allocation4 + $0x70] sm:$0xff]
    %v1045 = vld [vmem:[#allocation4 + $0x78] sm:$0xff]
    %v1047 = vsel %vm305, %v1029, 0
    %1049 = vmatpush.msra.mxu0 0.0
    %1050 = vmatpush.msra.mxu0 0.0
    %1051 = vmatpush.msra.mxu0 0.0
    %1052 = vmatpush.msra.mxu0 0.0
    %1053 = vmatpush.msra.mxu0 0.0
    %1054 = vmatpush.msra.mxu0 0.0
    %1055 = vmatpush.msra.mxu0 0.0
    %1056 = vmatpush.msra.mxu0 0.0
    %1057 = vmatpush.msra.mxu0 %v1044
    %1058 = vmatpush.msra.mxu0 %v1042
    %1059 = vmatpush.msra.mxu0 %v1040
    %1060 = vmatpush.msra.mxu0 %v1038
    %1061 = vmatpush.msra.mxu0 %v1036
    %1062 = vmatpush.msra.mxu0 %v1034
    %1063 = vmatpush.msra.mxu0 %v1032
    %1064 = vmatpush.msra.mxu0 %v1030
    %1065 = vmatmul.f32.gmra.mxu0 %v1047
    %v1066 = vpop.f32.mrf.mxu0
    %v1067 = vadd.f32 0.0, %v1066
    %1068 = vdwg.mxu0
    %1069 = vmatpush.msra.mxu0 0.0
    %1070 = vmatpush.msra.mxu0 0.0
    %1071 = vmatpush.msra.mxu0 0.0
    %1072 = vmatpush.msra.mxu0 0.0
    %1073 = vmatpush.msra.mxu0 0.0
    %1074 = vmatpush.msra.mxu0 0.0
    %1075 = vmatpush.msra.mxu0 0.0
    %1076 = vmatpush.msra.mxu0 0.0
    %1077 = vmatpush.msra.mxu0 %v1045
    %1078 = vmatpush.msra.mxu0 %v1043
    %1079 = vmatpush.msra.mxu0 %v1041
    %1080 = vmatpush.msra.mxu0 %v1039
    %1081 = vmatpush.msra.mxu0 %v1037
    %1082 = vmatpush.msra.mxu0 %v1035
    %1083 = vmatpush.msra.mxu0 %v1033
    %1084 = vmatpush.msra.mxu0 %v1031
    %1085 = vmatmul.f32.gmra.mxu0 %v1047
    %v1086 = vpop.f32.mrf.mxu0
    %v1087 = vadd.f32 0.0, %v1086
    %1088 = vdwg.mxu0
    %v1089 = vadd.f32 %v1027, %v1067
    %v1090 = vadd.f32 %v1028, %v1087
    %v1091 = vxor.u32 %v1089, 2147483648
    %v1092 = vmul.f32 %v1091, 1.442695
    %v1093 = vpow.pop %v1092
    %v1094 = vadd.f32 %v1093, 1.0
    %v1095 = vrcp.pop %v1094
    %v1096 = vmul.f32 %v1094, %v1095
    %v1097 = vsub.f32 1.0, %v1096
    %v1098 = vmul.f32 %v1095, %v1097
    %v1099 = vadd.f32 %v1095, %v1098
    %vm1100 = vweird.f32 %v1094
    %vm1101 = vweird.f32 %v1095
    %vm1102 = vmor %vm1100, %vm1101
    %v1103 = vsel %vm1102, %v1095, %v1099
    %v1104 = vand.u32 2147483647, %v1094
    %vm1105 = vcmp.eq.f32.partialorder %v1104, 8.507059e+37
    %v1106 = vand.u32 %v1094, 2147483648
    %v1107 = vor.u32 1.1754944e-38, %v1106
    %v1108 = vsel %vm1105, %v1107, %v1103
    %v1109 = vmul.f32 1.0, %v1108
    %v1110 = vtanh.pop %v1089
    %v1111 = vmul.f32 %v1109, %v973
    %1113 = vrot.lane.b32.xlu0 %v1110, 64
    %v1114 = vpop.permute.xlu0 %1113
    %v1116 = vmul.f32 %v1109, %v1114
    %1118 = vrot.lane.b32.xlu0 %v1116, 32
    %v1119 = vpop.permute.xlu0 %1118
    %v1121 = vadd.f32 %v1111, %v1119
    %v1122 = vtanh.pop %v1121
    %1124 = vrot.lane.b32.xlu0 %v1122, 64
    %v1125 = vpop.permute.xlu0 %1124
    %v1127 = vmul.f32 %v1109, %v1125
    %v1128 = vxor.u32 %v1090, 2147483648
    %v1129 = vmul.f32 %v1128, 1.442695
    %v1130 = vpow.pop %v1129
    %v1131 = vadd.f32 %v1130, 1.0
    %v1132 = vrcp.pop %v1131
    %v1133 = vmul.f32 %v1131, %v1132
    %v1134 = vsub.f32 1.0, %v1133
    %v1135 = vmul.f32 %v1132, %v1134
    %v1136 = vadd.f32 %v1132, %v1135
    %vm1137 = vweird.f32 %v1131
    %vm1138 = vweird.f32 %v1132
    %vm1139 = vmor %vm1137, %vm1138
    %v1140 = vsel %vm1139, %v1132, %v1136
    %v1141 = vand.u32 2147483647, %v1131
    %vm1142 = vcmp.eq.f32.partialorder %v1141, 8.507059e+37
    %v1143 = vand.u32 %v1131, 2147483648
    %v1144 = vor.u32 1.1754944e-38, %v1143
    %v1145 = vsel %vm1142, %v1144, %v1140
    %v1146 = vmul.f32 1.0, %v1145
    %v1147 = vtanh.pop %v1090
    %v1148 = vmul.f32 %v1146, %v1010
    %1150 = vrot.lane.b32.xlu0 %v1147, 64
    %v1151 = vpop.permute.xlu0 %1150
    %v1153 = vmul.f32 %v1146, %v1151
    %1155 = vrot.lane.b32.xlu0 %v1153, 32
    %v1156 = vpop.permute.xlu0 %1155
    %v1158 = vadd.f32 %v1148, %v1156
    %v1159 = vtanh.pop %v1158
    %1161 = vrot.lane.b32.xlu0 %v1159, 64
    %v1162 = vpop.permute.xlu0 %1161
    %v1164 = vmul.f32 %v1146, %v1162
    %1166 = vrot.lane.b32.xlu0 %v1127, 32
    %v1167 = vpop.permute.xlu0 %1166
    %1169 = vst.msk [vmem:[#allocation2 + $0x30] sm:$0xff] %vm278, %v1167
    %1171 = vrot.lane.b32.xlu0 %v1164, 64
    %v1172 = vpop.permute.xlu0 %1171
    %1174 = vst.msk [vmem:[#allocation2 + $0x8] sm:$0xff] %vm284, %v1172
    %v1175 = vld [vmem:[#allocation3 + $0x70] sm:$0xff]
    %v1176 = vld [vmem:[#allocation3 + $0x8] sm:$0xff]
    %v1177 = vsel %vm278, %v1167, %v1172
    %v1178 = vld [vmem:[#allocation4] sm:$0xff]
    %v1179 = vld [vmem:[#allocation4 + $0x8] sm:$0xff]
    %v1180 = vld [vmem:[#allocation4 + $0x10] sm:$0xff]
    %v1181 = vld [vmem:[#allocation4 + $0x18] sm:$0xff]
    %v1182 = vld [vmem:[#allocation4 + $0x20] sm:$0xff]
    %v1183 = vld [vmem:[#allocation4 + $0x28] sm:$0xff]
    %v1184 = vld [vmem:[#allocation4 + $0x30] sm:$0xff]
    %v1185 = vld [vmem:[#allocation4 + $0x38] sm:$0xff]
    %v1186 = vld [vmem:[#allocation4 + $0x40] sm:$0xff]
    %v1187 = vld [vmem:[#allocation4 + $0x48] sm:$0xff]
    %v1188 = vld [vmem:[#allocation4 + $0x50] sm:$0xff]
    %v1189 = vld [vmem:[#allocation4 + $0x58] sm:$0xff]
    %v1190 = vld [vmem:[#allocation4 + $0x60] sm:$0xff]
    %v1191 = vld [vmem:[#allocation4 + $0x68] sm:$0xff]
    %v1192 = vld [vmem:[#allocation4 + $0x70] sm:$0xff]
    %v1193 = vld [vmem:[#allocation4 + $0x78] sm:$0xff]
    %v1195 = vsel %vm305, %v1177, 0
    %1197 = vmatpush.msra.mxu0 0.0
    %1198 = vmatpush.msra.mxu0 0.0
    %1199 = vmatpush.msra.mxu0 0.0
    %1200 = vmatpush.msra.mxu0 0.0
    %1201 = vmatpush.msra.mxu0 0.0
    %1202 = vmatpush.msra.mxu0 0.0
    %1203 = vmatpush.msra.mxu0 0.0
    %1204 = vmatpush.msra.mxu0 0.0
    %1205 = vmatpush.msra.mxu0 %v1192
    %1206 = vmatpush.msra.mxu0 %v1190
    %1207 = vmatpush.msra.mxu0 %v1188
    %1208 = vmatpush.msra.mxu0 %v1186
    %1209 = vmatpush.msra.mxu0 %v1184
    %1210 = vmatpush.msra.mxu0 %v1182
    %1211 = vmatpush.msra.mxu0 %v1180
    %1212 = vmatpush.msra.mxu0 %v1178
    %1213 = vmatmul.f32.gmra.mxu0 %v1195
    %v1214 = vpop.f32.mrf.mxu0
    %v1215 = vadd.f32 0.0, %v1214
    %1216 = vdwg.mxu0
    %1217 = vmatpush.msra.mxu0 0.0
    %1218 = vmatpush.msra.mxu0 0.0
    %1219 = vmatpush.msra.mxu0 0.0
    %1220 = vmatpush.msra.mxu0 0.0
    %1221 = vmatpush.msra.mxu0 0.0
    %1222 = vmatpush.msra.mxu0 0.0
    %1223 = vmatpush.msra.mxu0 0.0
    %1224 = vmatpush.msra.mxu0 0.0
    %1225 = vmatpush.msra.mxu0 %v1193
    %1226 = vmatpush.msra.mxu0 %v1191
    %1227 = vmatpush.msra.mxu0 %v1189
    %1228 = vmatpush.msra.mxu0 %v1187
    %1229 = vmatpush.msra.mxu0 %v1185
    %1230 = vmatpush.msra.mxu0 %v1183
    %1231 = vmatpush.msra.mxu0 %v1181
    %1232 = vmatpush.msra.mxu0 %v1179
    %1233 = vmatmul.f32.gmra.mxu0 %v1195
    %v1234 = vpop.f32.mrf.mxu0
    %v1235 = vadd.f32 0.0, %v1234
    %1236 = vdwg.mxu0
    %v1237 = vadd.f32 %v1175, %v1215
    %v1238 = vadd.f32 %v1176, %v1235
    %v1239 = vxor.u32 %v1237, 2147483648
    %v1240 = vmul.f32 %v1239, 1.442695
    %v1241 = vpow.pop %v1240
    %v1242 = vadd.f32 %v1241, 1.0
    %v1243 = vrcp.pop %v1242
    %v1244 = vmul.f32 %v1242, %v1243
    %v1245 = vsub.f32 1.0, %v1244
    %v1246 = vmul.f32 %v1243, %v1245
    %v1247 = vadd.f32 %v1243, %v1246
    %vm1248 = vweird.f32 %v1242
    %vm1249 = vweird.f32 %v1243
    %vm1250 = vmor %vm1248, %vm1249
    %v1251 = vsel %vm1250, %v1243, %v1247
    %v1252 = vand.u32 2147483647, %v1242
    %vm1253 = vcmp.eq.f32.partialorder %v1252, 8.507059e+37
    %v1254 = vand.u32 %v1242, 2147483648
    %v1255 = vor.u32 1.1754944e-38, %v1254
    %v1256 = vsel %vm1253, %v1255, %v1251
    %v1257 = vmul.f32 1.0, %v1256
    %v1258 = vtanh.pop %v1237
    %v1259 = vmul.f32 %v1257, %v1121
    %1261 = vrot.lane.b32.xlu0 %v1258, 64
    %v1262 = vpop.permute.xlu0 %1261
    %v1264 = vmul.f32 %v1257, %v1262
    %1266 = vrot.lane.b32.xlu0 %v1264, 32
    %v1267 = vpop.permute.xlu0 %1266
    %v1269 = vadd.f32 %v1259, %v1267
    %v1270 = vtanh.pop %v1269
    %1272 = vrot.lane.b32.xlu0 %v1270, 64
    %v1273 = vpop.permute.xlu0 %1272
    %v1275 = vmul.f32 %v1257, %v1273
    %v1276 = vxor.u32 %v1238, 2147483648
    %v1277 = vmul.f32 %v1276, 1.442695
    %v1278 = vpow.pop %v1277
    %v1279 = vadd.f32 %v1278, 1.0
    %v1280 = vrcp.pop %v1279
    %v1281 = vmul.f32 %v1279, %v1280
    %v1282 = vsub.f32 1.0, %v1281
    %v1283 = vmul.f32 %v1280, %v1282
    %v1284 = vadd.f32 %v1280, %v1283
    %vm1285 = vweird.f32 %v1279
    %vm1286 = vweird.f32 %v1280
    %vm1287 = vmor %vm1285, %vm1286
    %v1288 = vsel %vm1287, %v1280, %v1284
    %v1289 = vand.u32 2147483647, %v1279
    %vm1290 = vcmp.eq.f32.partialorder %v1289, 8.507059e+37
    %v1291 = vand.u32 %v1279, 2147483648
    %v1292 = vor.u32 1.1754944e-38, %v1291
    %v1293 = vsel %vm1290, %v1292, %v1288
    %v1294 = vmul.f32 1.0, %v1293
    %v1295 = vtanh.pop %v1238
    %v1296 = vmul.f32 %v1294, %v1158
    %1298 = vrot.lane.b32.xlu0 %v1295, 64
    %v1299 = vpop.permute.xlu0 %1298
    %v1301 = vmul.f32 %v1294, %v1299
    %1303 = vrot.lane.b32.xlu0 %v1301, 32
    %v1304 = vpop.permute.xlu0 %1303
    %v1306 = vadd.f32 %v1296, %v1304
    %v1307 = vtanh.pop %v1306
    %1309 = vrot.lane.b32.xlu0 %v1307, 64
    %v1310 = vpop.permute.xlu0 %1309
    %v1312 = vmul.f32 %v1294, %v1310
    %1314 = vrot.lane.b32.xlu0 %v1275, 32
    %v1315 = vpop.permute.xlu0 %1314
    %1317 = vst.msk [vmem:[#allocation2 + $0x38] sm:$0xff] %vm278, %v1315
    %1319 = vrot.lane.b32.xlu0 %v1312, 64
    %v1320 = vpop.permute.xlu0 %1319
    %1322 = vst.msk [vmem:[#allocation2] sm:$0xff] %vm284, %v1320
    %v1323 = vld [vmem:[#allocation2] sm:$0xff]
    %v1324 = vld [vmem:[#allocation2 + $0x8] sm:$0xff]
    %v1325 = vld [vmem:[#allocation2 + $0x10] sm:$0xff]
    %v1326 = vld [vmem:[#allocation2 + $0x18] sm:$0xff]
    %v1327 = vld [vmem:[#allocation2 + $0x20] sm:$0xff]
    %v1328 = vld [vmem:[#allocation2 + $0x28] sm:$0xff]
    %v1329 = vld [vmem:[#allocation2 + $0x30] sm:$0xff]
    %v1330 = vld [vmem:[#allocation2 + $0x38] sm:$0xff]
    %v1331 = vpack.c.bf16 %v1323, %v1323
    %v1332 = vpack.c.bf16 %v1324, %v1324
    %v1333 = vpack.c.bf16 %v1325, %v1325
    %v1334 = vpack.c.bf16 %v1326, %v1326
    %v1335 = vpack.c.bf16 %v1327, %v1327
    %v1336 = vpack.c.bf16 %v1328, %v1328
    %v1337 = vpack.c.bf16 %v1329, %v1329
    %v1338 = vpack.c.bf16 %v1330, %v1330
    %v1339 = vld [vmem:[%s4] sm:$0xf]
    %v1340 = vld [vmem:[%s4 + $0x8] sm:$0xf]
    %v1341 = vld [vmem:[%s4 + $0x10] sm:$0xf]
    %v1342 = vld [vmem:[%s4 + $0x18] sm:$0xf]
    %v1343 = vld [vmem:[%s4 + $0x20] sm:$0xf]
    %v1344 = vld [vmem:[%s4 + $0x28] sm:$0xf]
    %v1345 = vld [vmem:[%s4 + $0x30] sm:$0xf]
    %v1346 = vld [vmem:[%s4 + $0x38] sm:$0xf]
    %v1347 = vld [vmem:[%s5] sm:$0x1]
    %v1349 = vperm.slane %v1347, 0
    %v1359 = vunpack.c.l.b16 %v1331
    %v1360 = vunpack.c.l.b16 %v1332
    %v1361 = vunpack.c.l.b16 %v1333
    %v1362 = vunpack.c.l.b16 %v1334
    %v1363 = vunpack.c.l.b16 %v1335
    %v1364 = vunpack.c.l.b16 %v1336
    %v1365 = vunpack.c.l.b16 %v1337
    %v1366 = vunpack.c.l.b16 %v1338
    %v1367 = vpack.c.b16 %v1360, %v1359
    %v1368 = vpack.c.b16 %v1362, %v1361
    %v1369 = vpack.c.b16 %v1364, %v1363
    %v1370 = vpack.c.b16 %v1366, %v1365
    %v1379 = vunpack.c.l.b16 %v1339
    %v1380 = vunpack.c.l.b16 %v1340
    %v1381 = vunpack.c.l.b16 %v1341
    %v1382 = vunpack.c.l.b16 %v1342
    %v1383 = vunpack.c.l.b16 %v1343
    %v1384 = vunpack.c.l.b16 %v1344
    %v1385 = vunpack.c.l.b16 %v1345
    %v1386 = vunpack.c.l.b16 %v1346
    %v1387 = vpack.c.b16 %v1380, %v1379
    %v1388 = vpack.c.b16 %v1382, %v1381
    %v1389 = vpack.c.b16 %v1384, %v1383
    %v1390 = vpack.c.b16 %v1386, %v1385
    %v1396 = vsel %vm305, %v1367, 0
    %v1399 = vsel %vm305, %v1368, 0
    %v1402 = vsel %vm305, %v1369, 0
    %v1405 = vsel %vm305, %v1370, 0
    %1407 = vmatpush.bf16.msra.mxu0 0
    %1408 = vmatpush.bf16.msra.mxu0 0
    %1409 = vmatpush.bf16.msra.mxu0 0
    %1410 = vmatpush.bf16.msra.mxu0 0
    %1411 = vmatpush.bf16.msra.mxu0 %v1390
    %1412 = vmatpush.bf16.msra.mxu0 %v1389
    %1413 = vmatpush.bf16.msra.mxu0 %v1388
    %1414 = vmatpush.bf16.msra.mxu0 %v1387
    %1415 = vmatmul.bf16.gmra.mxu0 %v1396
    %v1416 = vpop.f32.mrf.mxu0
    %v1417 = vadd.f32 %v1349, %v1416
    %v1418 = vpop.f32.mrf.mxu0
    %v1419 = vadd.f32 %v1349, %v1418
    %1420 = vmatmul.bf16.gmra.mxu0 %v1399
    %v1421 = vpop.f32.mrf.mxu0
    %v1422 = vadd.f32 %v1349, %v1421
    %v1423 = vpop.f32.mrf.mxu0
    %v1424 = vadd.f32 %v1349, %v1423
    %1425 = vmatmul.bf16.gmra.mxu0 %v1402
    %v1426 = vpop.f32.mrf.mxu0
    %v1427 = vadd.f32 %v1349, %v1426
    %v1428 = vpop.f32.mrf.mxu0
    %v1429 = vadd.f32 %v1349, %v1428
    %1430 = vmatmul.bf16.gmra.mxu0 %v1405
    %v1431 = vpop.f32.mrf.mxu0
    %v1432 = vadd.f32 %v1349, %v1431
    %v1433 = vpop.f32.mrf.mxu0
    %v1434 = vadd.f32 %v1349, %v1433
    %1435 = vdwg.mxu0
    %1436 = vst [vmem:[#allocation3] sm:$0xff] %v1417
    %1437 = vst [vmem:[#allocation3 + $0x10] sm:$0xff] %v1419
    %1438 = vst [vmem:[#allocation3 + $0x20] sm:$0xff] %v1422
    %1439 = vst [vmem:[#allocation3 + $0x30] sm:$0xff] %v1424
    %1440 = vst [vmem:[#allocation3 + $0x40] sm:$0xff] %v1427
    %1441 = vst [vmem:[#allocation3 + $0x50] sm:$0xff] %v1429
    %1442 = vst [vmem:[#allocation3 + $0x60] sm:$0xff] %v1432
    %1443 = vst [vmem:[#allocation3 + $0x70] sm:$0xff] %v1434
    %v1444 = vld [vmem:[%s4 + $0x4] sm:$0xf]
    %v1445 = vld [vmem:[%s4 + $0xc] sm:$0xf]
    %v1446 = vld [vmem:[%s4 + $0x14] sm:$0xf]
    %v1447 = vld [vmem:[%s4 + $0x1c] sm:$0xf]
    %v1448 = vld [vmem:[%s4 + $0x24] sm:$0xf]
    %v1449 = vld [vmem:[%s4 + $0x2c] sm:$0xf]
    %v1450 = vld [vmem:[%s4 + $0x34] sm:$0xf]
    %v1451 = vld [vmem:[%s4 + $0x3c] sm:$0xf]
    %v1452 = vld [vmem:[%s5 + $0x1] sm:$0x1]
    %v1454 = vperm.slane %v1452, 0
    %v1464 = vunpack.c.l.b16 %v1444
    %v1465 = vunpack.c.l.b16 %v1445
    %v1466 = vunpack.c.l.b16 %v1446
    %v1467 = vunpack.c.l.b16 %v1447
    %v1468 = vunpack.c.l.b16 %v1448
    %v1469 = vunpack.c.l.b16 %v1449
    %v1470 = vunpack.c.l.b16 %v1450
    %v1471 = vunpack.c.l.b16 %v1451
    %v1472 = vpack.c.b16 %v1465, %v1464
    %v1473 = vpack.c.b16 %v1467, %v1466
    %v1474 = vpack.c.b16 %v1469, %v1468
    %v1475 = vpack.c.b16 %v1471, %v1470
    %v1481 = vsel %vm305, %v1338, 0
    %1483 = vmatpush.bf16.msra.mxu0 0
    %1484 = vmatpush.bf16.msra.mxu0 0
    %1485 = vmatpush.bf16.msra.mxu0 0
    %1486 = vmatpush.bf16.msra.mxu0 0
    %1487 = vmatpush.bf16.msra.mxu0 %v1475
    %1488 = vmatpush.bf16.msra.mxu0 %v1474
    %1489 = vmatpush.bf16.msra.mxu0 %v1473
    %1490 = vmatpush.bf16.msra.mxu0 %v1472
    %1491 = vmatmul.bf16.gmra.mxu0 %v1481
    %v1492 = vpop.f32.mrf.mxu0
    %v1493 = vadd.f32 %v1454, %v1492
    %v1494 = vpop.f32.mrf.mxu0
    %1495 = vdwg.mxu0
    %v1496 = vxor.u32 %v1493, 2147483648
    %v1497 = vmul.f32 %v1496, 1.442695
    %v1498 = vpow.pop %v1497
    %v1499 = vadd.f32 %v1498, 1.0
    %v1500 = vrcp.pop %v1499
    %v1501 = vmul.f32 %v1499, %v1500
    %v1502 = vsub.f32 1.0, %v1501
    %v1503 = vmul.f32 %v1500, %v1502
    %v1504 = vadd.f32 %v1500, %v1503
    %vm1505 = vweird.f32 %v1499
    %vm1506 = vweird.f32 %v1500
    %vm1507 = vmor %vm1505, %vm1506
    %v1508 = vsel %vm1507, %v1500, %v1504
    %v1509 = vand.u32 2147483647, %v1499
    %vm1510 = vcmp.eq.f32.partialorder %v1509, 8.507059e+37
    %v1511 = vand.u32 %v1499, 2147483648
    %v1512 = vor.u32 1.1754944e-38, %v1511
    %v1513 = vsel %vm1510, %v1512, %v1508
    %v1514 = vmul.f32 1.0, %v1513
    %v1515 = vtanh.pop %v1493
    %v1516 = vmul.f32 %v1514, 0.0
    %1518 = vrot.lane.b32.xlu0 %v1515, 64
    %v1519 = vpop.permute.xlu0 %1518
    %v1521 = vmul.f32 %v1514, %v1519
    %1523 = vrot.lane.b32.xlu0 %v1521, 32
    %v1524 = vpop.permute.xlu0 %1523
    %v1526 = vadd.f32 %v1516, %v1524
    %v1527 = vtanh.pop %v1526
    %1529 = vrot.lane.b32.xlu0 %v1527, 64
    %v1530 = vpop.permute.xlu0 %1529
    %v1532 = vmul.f32 %v1514, %v1530
    %v1533 = vld [vmem:[#allocation3] sm:$0xff]
    %v1534 = vxor.u32 %v1533, 2147483648
    %v1535 = vmul.f32 %v1534, 1.442695
    %v1536 = vpow.pop %v1535
    %v1537 = vadd.f32 %v1536, 1.0
    %v1538 = vrcp.pop %v1537
    %v1539 = vmul.f32 %v1537, %v1538
    %v1540 = vsub.f32 1.0, %v1539
    %v1541 = vmul.f32 %v1538, %v1540
    %v1542 = vadd.f32 %v1538, %v1541
    %vm1543 = vweird.f32 %v1537
    %vm1544 = vweird.f32 %v1538
    %vm1545 = vmor %vm1543, %vm1544
    %v1546 = vsel %vm1545, %v1538, %v1542
    %v1547 = vand.u32 2147483647, %v1537
    %vm1548 = vcmp.eq.f32.partialorder %v1547, 8.507059e+37
    %v1549 = vand.u32 %v1537, 2147483648
    %v1550 = vor.u32 1.1754944e-38, %v1549
    %v1551 = vsel %vm1548, %v1550, %v1546
    %v1552 = vmul.f32 1.0, %v1551
    %v1553 = vtanh.pop %v1533
    %v1554 = vmul.f32 %v1552, 0.0
    %1556 = vrot.lane.b32.xlu0 %v1553, 64
    %v1557 = vpop.permute.xlu0 %1556
    %v1559 = vmul.f32 %v1552, %v1557
    %1561 = vrot.lane.b32.xlu0 %v1559, 32
    %v1562 = vpop.permute.xlu0 %1561
    %v1564 = vadd.f32 %v1554, %v1562
    %v1565 = vtanh.pop %v1564
    %1567 = vrot.lane.b32.xlu0 %v1565, 64
    %v1568 = vpop.permute.xlu0 %1567
    %v1570 = vmul.f32 %v1552, %v1568
    %v1571 = vld [vmem:[#allocation3 + $0x10] sm:$0xff]
    %v1572 = vld [vmem:[#allocation6] sm:$0xff]
    %v1573 = vld [vmem:[#allocation6 + $0x10] sm:$0xff]
    %v1574 = vld [vmem:[#allocation6 + $0x20] sm:$0xff]
    %v1575 = vld [vmem:[#allocation6 + $0x30] sm:$0xff]
    %1577 = vrot.lane.b32.xlu0 %v1570, 32
    %v1578 = vpop.permute.xlu0 %1577
    %v1579 = vsel %vm278, %v1578, 0
    %1581 = vmatpush.msra.mxu0 0.0
    %1582 = vmatpush.msra.mxu0 0.0
    %1583 = vmatpush.msra.mxu0 0.0
    %1584 = vmatpush.msra.mxu0 0.0
    %1585 = vmatpush.msra.mxu0 0.0
    %1586 = vmatpush.msra.mxu0 0.0
    %1587 = vmatpush.msra.mxu0 0.0
    %1588 = vmatpush.msra.mxu0 0.0
    %1589 = vmatpush.msra.mxu0 0.0
    %1590 = vmatpush.msra.mxu0 0.0
    %1591 = vmatpush.msra.mxu0 0.0
    %1592 = vmatpush.msra.mxu0 0.0
    %1593 = vmatpush.msra.mxu0 %v1575
    %1594 = vmatpush.msra.mxu0 %v1574
    %1595 = vmatpush.msra.mxu0 %v1573
    %1596 = vmatpush.msra.mxu0 %v1572
    %1597 = vmatmul.f32.gmra.mxu0 %v1579
    %v1598 = vpop.f32.mrf.mxu0
    %v1599 = vadd.f32 0.0, %v1598
    %1600 = vdwg.mxu0
    %v1601 = vadd.f32 %v1571, %v1599
    %v1602 = vxor.u32 %v1601, 2147483648
    %v1603 = vmul.f32 %v1602, 1.442695
    %v1604 = vpow.pop %v1603
    %v1605 = vadd.f32 %v1604, 1.0
    %v1606 = vrcp.pop %v1605
    %v1607 = vmul.f32 %v1605, %v1606
    %v1608 = vsub.f32 1.0, %v1607
    %v1609 = vmul.f32 %v1606, %v1608
    %v1610 = vadd.f32 %v1606, %v1609
    %vm1611 = vweird.f32 %v1605
    %vm1612 = vweird.f32 %v1606
    %vm1613 = vmor %vm1611, %vm1612
    %v1614 = vsel %vm1613, %v1606, %v1610
    %v1615 = vand.u32 2147483647, %v1605
    %vm1616 = vcmp.eq.f32.partialorder %v1615, 8.507059e+37
    %v1617 = vand.u32 %v1605, 2147483648
    %v1618 = vor.u32 1.1754944e-38, %v1617
    %v1619 = vsel %vm1616, %v1618, %v1614
    %v1620 = vmul.f32 1.0, %v1619
    %v1621 = vtanh.pop %v1601
    %v1622 = vmul.f32 %v1620, %v1564
    %1624 = vrot.lane.b32.xlu0 %v1621, 64
    %v1625 = vpop.permute.xlu0 %1624
    %v1627 = vmul.f32 %v1620, %v1625
    %1629 = vrot.lane.b32.xlu0 %v1627, 32
    %v1630 = vpop.permute.xlu0 %1629
    %v1632 = vadd.f32 %v1622, %v1630
    %v1633 = vtanh.pop %v1632
    %1635 = vrot.lane.b32.xlu0 %v1633, 64
    %v1636 = vpop.permute.xlu0 %1635
    %v1638 = vmul.f32 %v1620, %v1636
    %v1639 = vld [vmem:[#allocation3 + $0x20] sm:$0xff]
    %1641 = vrot.lane.b32.xlu0 %v1638, 32
    %v1642 = vpop.permute.xlu0 %1641
    %v1643 = vsel %vm278, %v1642, 0
    %1645 = vmatpush.msra.mxu0 0.0
    %1646 = vmatpush.msra.mxu0 0.0
    %1647 = vmatpush.msra.mxu0 0.0
    %1648 = vmatpush.msra.mxu0 0.0
    %1649 = vmatpush.msra.mxu0 0.0
    %1650 = vmatpush.msra.mxu0 0.0
    %1651 = vmatpush.msra.mxu0 0.0
    %1652 = vmatpush.msra.mxu0 0.0
    %1653 = vmatpush.msra.mxu0 0.0
    %1654 = vmatpush.msra.mxu0 0.0
    %1655 = vmatpush.msra.mxu0 0.0
    %1656 = vmatpush.msra.mxu0 0.0
    %1657 = vmatpush.msra.mxu0 %v1575
    %1658 = vmatpush.msra.mxu0 %v1574
    %1659 = vmatpush.msra.mxu0 %v1573
    %1660 = vmatpush.msra.mxu0 %v1572
    %1661 = vmatmul.f32.gmra.mxu0 %v1643
    %v1662 = vpop.f32.mrf.mxu0
    %v1663 = vadd.f32 0.0, %v1662
    %1664 = vdwg.mxu0
    %v1665 = vadd.f32 %v1639, %v1663
    %v1666 = vxor.u32 %v1665, 2147483648
    %v1667 = vmul.f32 %v1666, 1.442695
    %v1668 = vpow.pop %v1667
    %v1669 = vadd.f32 %v1668, 1.0
    %v1670 = vrcp.pop %v1669
    %v1671 = vmul.f32 %v1669, %v1670
    %v1672 = vsub.f32 1.0, %v1671
    %v1673 = vmul.f32 %v1670, %v1672
    %v1674 = vadd.f32 %v1670, %v1673
    %vm1675 = vweird.f32 %v1669
    %vm1676 = vweird.f32 %v1670
    %vm1677 = vmor %vm1675, %vm1676
    %v1678 = vsel %vm1677, %v1670, %v1674
    %v1679 = vand.u32 2147483647, %v1669
    %vm1680 = vcmp.eq.f32.partialorder %v1679, 8.507059e+37
    %v1681 = vand.u32 %v1669, 2147483648
    %v1682 = vor.u32 1.1754944e-38, %v1681
    %v1683 = vsel %vm1680, %v1682, %v1678
    %v1684 = vmul.f32 1.0, %v1683
    %v1685 = vtanh.pop %v1665
    %v1686 = vmul.f32 %v1684, %v1632
    %1688 = vrot.lane.b32.xlu0 %v1685, 64
    %v1689 = vpop.permute.xlu0 %1688
    %v1691 = vmul.f32 %v1684, %v1689
    %1693 = vrot.lane.b32.xlu0 %v1691, 32
    %v1694 = vpop.permute.xlu0 %1693
    %v1696 = vadd.f32 %v1686, %v1694
    %v1697 = vtanh.pop %v1696
    %1699 = vrot.lane.b32.xlu0 %v1697, 64
    %v1700 = vpop.permute.xlu0 %1699
    %v1702 = vmul.f32 %v1684, %v1700
    %v1703 = vld [vmem:[#allocation3 + $0x30] sm:$0xff]
    %1705 = vrot.lane.b32.xlu0 %v1702, 32
    %v1706 = vpop.permute.xlu0 %1705
    %v1707 = vsel %vm278, %v1706, 0
    %1709 = vmatpush.msra.mxu0 0.0
    %1710 = vmatpush.msra.mxu0 0.0
    %1711 = vmatpush.msra.mxu0 0.0
    %1712 = vmatpush.msra.mxu0 0.0
    %1713 = vmatpush.msra.mxu0 0.0
    %1714 = vmatpush.msra.mxu0 0.0
    %1715 = vmatpush.msra.mxu0 0.0
    %1716 = vmatpush.msra.mxu0 0.0
    %1717 = vmatpush.msra.mxu0 0.0
    %1718 = vmatpush.msra.mxu0 0.0
    %1719 = vmatpush.msra.mxu0 0.0
    %1720 = vmatpush.msra.mxu0 0.0
    %1721 = vmatpush.msra.mxu0 %v1575
    %1722 = vmatpush.msra.mxu0 %v1574
    %1723 = vmatpush.msra.mxu0 %v1573
    %1724 = vmatpush.msra.mxu0 %v1572
    %1725 = vmatmul.f32.gmra.mxu0 %v1707
    %v1726 = vpop.f32.mrf.mxu0
    %v1727 = vadd.f32 0.0, %v1726
    %1728 = vdwg.mxu0
    %v1729 = vadd.f32 %v1703, %v1727
    %v1730 = vxor.u32 %v1729, 2147483648
    %v1731 = vmul.f32 %v1730, 1.442695
    %v1732 = vpow.pop %v1731
    %v1733 = vadd.f32 %v1732, 1.0
    %v1734 = vrcp.pop %v1733
    %v1735 = vmul.f32 %v1733, %v1734
    %v1736 = vsub.f32 1.0, %v1735
    %v1737 = vmul.f32 %v1734, %v1736
    %v1738 = vadd.f32 %v1734, %v1737
    %vm1739 = vweird.f32 %v1733
    %vm1740 = vweird.f32 %v1734
    %vm1741 = vmor %vm1739, %vm1740
    %v1742 = vsel %vm1741, %v1734, %v1738
    %v1743 = vand.u32 2147483647, %v1733
    %vm1744 = vcmp.eq.f32.partialorder %v1743, 8.507059e+37
    %v1745 = vand.u32 %v1733, 2147483648
    %v1746 = vor.u32 1.1754944e-38, %v1745
    %v1747 = vsel %vm1744, %v1746, %v1742
    %v1748 = vmul.f32 1.0, %v1747
    %v1749 = vtanh.pop %v1729
    %v1750 = vmul.f32 %v1748, %v1696
    %1752 = vrot.lane.b32.xlu0 %v1749, 64
    %v1753 = vpop.permute.xlu0 %1752
    %v1755 = vmul.f32 %v1748, %v1753
    %1757 = vrot.lane.b32.xlu0 %v1755, 32
    %v1758 = vpop.permute.xlu0 %1757
    %v1760 = vadd.f32 %v1750, %v1758
    %v1761 = vtanh.pop %v1760
    %1763 = vrot.lane.b32.xlu0 %v1761, 64
    %v1764 = vpop.permute.xlu0 %1763
    %v1766 = vmul.f32 %v1748, %v1764
    %v1767 = vld [vmem:[#allocation3 + $0x40] sm:$0xff]
    %1769 = vrot.lane.b32.xlu0 %v1766, 32
    %v1770 = vpop.permute.xlu0 %1769
    %v1771 = vsel %vm278, %v1770, 0
    %1773 = vmatpush.msra.mxu0 0.0
    %1774 = vmatpush.msra.mxu0 0.0
    %1775 = vmatpush.msra.mxu0 0.0
    %1776 = vmatpush.msra.mxu0 0.0
    %1777 = vmatpush.msra.mxu0 0.0
    %1778 = vmatpush.msra.mxu0 0.0
    %1779 = vmatpush.msra.mxu0 0.0
    %1780 = vmatpush.msra.mxu0 0.0
    %1781 = vmatpush.msra.mxu0 0.0
    %1782 = vmatpush.msra.mxu0 0.0
    %1783 = vmatpush.msra.mxu0 0.0
    %1784 = vmatpush.msra.mxu0 0.0
    %1785 = vmatpush.msra.mxu0 %v1575
    %1786 = vmatpush.msra.mxu0 %v1574
    %1787 = vmatpush.msra.mxu0 %v1573
    %1788 = vmatpush.msra.mxu0 %v1572
    %1789 = vmatmul.f32.gmra.mxu0 %v1771
    %v1790 = vpop.f32.mrf.mxu0
    %v1791 = vadd.f32 0.0, %v1790
    %1792 = vdwg.mxu0
    %v1793 = vadd.f32 %v1767, %v1791
    %v1794 = vxor.u32 %v1793, 2147483648
    %v1795 = vmul.f32 %v1794, 1.442695
    %v1796 = vpow.pop %v1795
    %v1797 = vadd.f32 %v1796, 1.0
    %v1798 = vrcp.pop %v1797
    %v1799 = vmul.f32 %v1797, %v1798
    %v1800 = vsub.f32 1.0, %v1799
    %v1801 = vmul.f32 %v1798, %v1800
    %v1802 = vadd.f32 %v1798, %v1801
    %vm1803 = vweird.f32 %v1797
    %vm1804 = vweird.f32 %v1798
    %vm1805 = vmor %vm1803, %vm1804
    %v1806 = vsel %vm1805, %v1798, %v1802
    %v1807 = vand.u32 2147483647, %v1797
    %vm1808 = vcmp.eq.f32.partialorder %v1807, 8.507059e+37
    %v1809 = vand.u32 %v1797, 2147483648
    %v1810 = vor.u32 1.1754944e-38, %v1809
    %v1811 = vsel %vm1808, %v1810, %v1806
    %v1812 = vmul.f32 1.0, %v1811
    %v1813 = vtanh.pop %v1793
    %v1814 = vmul.f32 %v1812, %v1760
    %1816 = vrot.lane.b32.xlu0 %v1813, 64
    %v1817 = vpop.permute.xlu0 %1816
    %v1819 = vmul.f32 %v1812, %v1817
    %1821 = vrot.lane.b32.xlu0 %v1819, 32
    %v1822 = vpop.permute.xlu0 %1821
    %v1824 = vadd.f32 %v1814, %v1822
    %v1825 = vtanh.pop %v1824
    %1827 = vrot.lane.b32.xlu0 %v1825, 64
    %v1828 = vpop.permute.xlu0 %1827
    %v1830 = vmul.f32 %v1812, %v1828
    %v1831 = vld [vmem:[#allocation3 + $0x50] sm:$0xff]
    %1833 = vrot.lane.b32.xlu0 %v1830, 32
    %v1834 = vpop.permute.xlu0 %1833
    %v1835 = vsel %vm278, %v1834, 0
    %1837 = vmatpush.msra.mxu0 0.0
    %1838 = vmatpush.msra.mxu0 0.0
    %1839 = vmatpush.msra.mxu0 0.0
    %1840 = vmatpush.msra.mxu0 0.0
    %1841 = vmatpush.msra.mxu0 0.0
    %1842 = vmatpush.msra.mxu0 0.0
    %1843 = vmatpush.msra.mxu0 0.0
    %1844 = vmatpush.msra.mxu0 0.0
    %1845 = vmatpush.msra.mxu0 0.0
    %1846 = vmatpush.msra.mxu0 0.0
    %1847 = vmatpush.msra.mxu0 0.0
    %1848 = vmatpush.msra.mxu0 0.0
    %1849 = vmatpush.msra.mxu0 %v1575
    %1850 = vmatpush.msra.mxu0 %v1574
    %1851 = vmatpush.msra.mxu0 %v1573
    %1852 = vmatpush.msra.mxu0 %v1572
    %1853 = vmatmul.f32.gmra.mxu0 %v1835
    %v1854 = vpop.f32.mrf.mxu0
    %v1855 = vadd.f32 0.0, %v1854
    %1856 = vdwg.mxu0
    %v1857 = vadd.f32 %v1831, %v1855
    %v1858 = vxor.u32 %v1857, 2147483648
    %v1859 = vmul.f32 %v1858, 1.442695
    %v1860 = vpow.pop %v1859
    %v1861 = vadd.f32 %v1860, 1.0
    %v1862 = vrcp.pop %v1861
    %v1863 = vmul.f32 %v1861, %v1862
    %v1864 = vsub.f32 1.0, %v1863
    %v1865 = vmul.f32 %v1862, %v1864
    %v1866 = vadd.f32 %v1862, %v1865
    %vm1867 = vweird.f32 %v1861
    %vm1868 = vweird.f32 %v1862
    %vm1869 = vmor %vm1867, %vm1868
    %v1870 = vsel %vm1869, %v1862, %v1866
    %v1871 = vand.u32 2147483647, %v1861
    %vm1872 = vcmp.eq.f32.partialorder %v1871, 8.507059e+37
    %v1873 = vand.u32 %v1861, 2147483648
    %v1874 = vor.u32 1.1754944e-38, %v1873
    %v1875 = vsel %vm1872, %v1874, %v1870
    %v1876 = vmul.f32 1.0, %v1875
    %v1877 = vtanh.pop %v1857
    %v1878 = vmul.f32 %v1876, %v1824
    %1880 = vrot.lane.b32.xlu0 %v1877, 64
    %v1881 = vpop.permute.xlu0 %1880
    %v1883 = vmul.f32 %v1876, %v1881
    %1885 = vrot.lane.b32.xlu0 %v1883, 32
    %v1886 = vpop.permute.xlu0 %1885
    %v1888 = vadd.f32 %v1878, %v1886
    %v1889 = vtanh.pop %v1888
    %1891 = vrot.lane.b32.xlu0 %v1889, 64
    %v1892 = vpop.permute.xlu0 %1891
    %v1894 = vmul.f32 %v1876, %v1892
    %v1895 = vld [vmem:[#allocation3 + $0x60] sm:$0xff]
    %1897 = vrot.lane.b32.xlu0 %v1894, 32
    %v1898 = vpop.permute.xlu0 %1897
    %v1899 = vsel %vm278, %v1898, 0
    %1901 = vmatpush.msra.mxu0 0.0
    %1902 = vmatpush.msra.mxu0 0.0
    %1903 = vmatpush.msra.mxu0 0.0
    %1904 = vmatpush.msra.mxu0 0.0
    %1905 = vmatpush.msra.mxu0 0.0
    %1906 = vmatpush.msra.mxu0 0.0
    %1907 = vmatpush.msra.mxu0 0.0
    %1908 = vmatpush.msra.mxu0 0.0
    %1909 = vmatpush.msra.mxu0 0.0
    %1910 = vmatpush.msra.mxu0 0.0
    %1911 = vmatpush.msra.mxu0 0.0
    %1912 = vmatpush.msra.mxu0 0.0
    %1913 = vmatpush.msra.mxu0 %v1575
    %1914 = vmatpush.msra.mxu0 %v1574
    %1915 = vmatpush.msra.mxu0 %v1573
    %1916 = vmatpush.msra.mxu0 %v1572
    %1917 = vmatmul.f32.gmra.mxu0 %v1899
    %v1918 = vpop.f32.mrf.mxu0
    %v1919 = vadd.f32 0.0, %v1918
    %1920 = vdwg.mxu0
    %v1921 = vadd.f32 %v1895, %v1919
    %v1922 = vxor.u32 %v1921, 2147483648
    %v1923 = vmul.f32 %v1922, 1.442695
    %v1924 = vpow.pop %v1923
    %v1925 = vadd.f32 %v1924, 1.0
    %v1926 = vrcp.pop %v1925
    %v1927 = vmul.f32 %v1925, %v1926
    %v1928 = vsub.f32 1.0, %v1927
    %v1929 = vmul.f32 %v1926, %v1928
    %v1930 = vadd.f32 %v1926, %v1929
    %vm1931 = vweird.f32 %v1925
    %vm1932 = vweird.f32 %v1926
    %vm1933 = vmor %vm1931, %vm1932
    %v1934 = vsel %vm1933, %v1926, %v1930
    %v1935 = vand.u32 2147483647, %v1925
    %vm1936 = vcmp.eq.f32.partialorder %v1935, 8.507059e+37
    %v1937 = vand.u32 %v1925, 2147483648
    %v1938 = vor.u32 1.1754944e-38, %v1937
    %v1939 = vsel %vm1936, %v1938, %v1934
    %v1940 = vmul.f32 1.0, %v1939
    %v1941 = vtanh.pop %v1921
    %v1942 = vmul.f32 %v1940, %v1888
    %1944 = vrot.lane.b32.xlu0 %v1941, 64
    %v1945 = vpop.permute.xlu0 %1944
    %v1947 = vmul.f32 %v1940, %v1945
    %1949 = vrot.lane.b32.xlu0 %v1947, 32
    %v1950 = vpop.permute.xlu0 %1949
    %v1952 = vadd.f32 %v1942, %v1950
    %v1953 = vtanh.pop %v1952
    %1955 = vrot.lane.b32.xlu0 %v1953, 64
    %v1956 = vpop.permute.xlu0 %1955
    %v1958 = vmul.f32 %v1940, %v1956
    %v1959 = vld [vmem:[#allocation3 + $0x70] sm:$0xff]
    %1961 = vrot.lane.b32.xlu0 %v1958, 32
    %v1962 = vpop.permute.xlu0 %1961
    %v1963 = vsel %vm278, %v1962, 0
    %1965 = vmatpush.msra.mxu0 0.0
    %1966 = vmatpush.msra.mxu0 0.0
    %1967 = vmatpush.msra.mxu0 0.0
    %1968 = vmatpush.msra.mxu0 0.0
    %1969 = vmatpush.msra.mxu0 0.0
    %1970 = vmatpush.msra.mxu0 0.0
    %1971 = vmatpush.msra.mxu0 0.0
    %1972 = vmatpush.msra.mxu0 0.0
    %1973 = vmatpush.msra.mxu0 0.0
    %1974 = vmatpush.msra.mxu0 0.0
    %1975 = vmatpush.msra.mxu0 0.0
    %1976 = vmatpush.msra.mxu0 0.0
    %1977 = vmatpush.msra.mxu0 %v1575
    %1978 = vmatpush.msra.mxu0 %v1574
    %1979 = vmatpush.msra.mxu0 %v1573
    %1980 = vmatpush.msra.mxu0 %v1572
    %1981 = vmatmul.f32.gmra.mxu0 %v1963
    %v1982 = vpop.f32.mrf.mxu0
    %v1983 = vadd.f32 0.0, %v1982
    %1984 = vdwg.mxu0
    %v1985 = vadd.f32 %v1959, %v1983
    %v1986 = vxor.u32 %v1985, 2147483648
    %v1987 = vmul.f32 %v1986, 1.442695
    %v1988 = vpow.pop %v1987
    %v1989 = vadd.f32 %v1988, 1.0
    %v1990 = vrcp.pop %v1989
    %v1991 = vmul.f32 %v1989, %v1990
    %v1992 = vsub.f32 1.0, %v1991
    %v1993 = vmul.f32 %v1990, %v1992
    %v1994 = vadd.f32 %v1990, %v1993
    %vm1995 = vweird.f32 %v1989
    %vm1996 = vweird.f32 %v1990
    %vm1997 = vmor %vm1995, %vm1996
    %v1998 = vsel %vm1997, %v1990, %v1994
    %v1999 = vand.u32 2147483647, %v1989
    %vm2000 = vcmp.eq.f32.partialorder %v1999, 8.507059e+37
    %v2001 = vand.u32 %v1989, 2147483648
    %v2002 = vor.u32 1.1754944e-38, %v2001
    %v2003 = vsel %vm2000, %v2002, %v1998
    %v2004 = vmul.f32 1.0, %v2003
    %v2005 = vtanh.pop %v1985
    %v2006 = vmul.f32 %v2004, %v1952
    %2008 = vrot.lane.b32.xlu0 %v2005, 64
    %v2009 = vpop.permute.xlu0 %2008
    %v2011 = vmul.f32 %v2004, %v2009
    %2013 = vrot.lane.b32.xlu0 %v2011, 32
    %v2014 = vpop.permute.xlu0 %2013
    %v2016 = vadd.f32 %v2006, %v2014
    %v2017 = vtanh.pop %v2016
    %2019 = vrot.lane.b32.xlu0 %v2017, 64
    %v2020 = vpop.permute.xlu0 %2019
    %v2022 = vmul.f32 %v2004, %v2020
    %2024 = vrot.lane.b32.xlu0 %v2022, 32
    %v2025 = vpop.permute.xlu0 %2024
    %2028 = vrot.lane.b32.xlu0 %v1532, 64
    %v2029 = vpop.permute.xlu0 %2028
    %v2031 = vsel %vm278, %v2025, %v2029
    %v2032 = vld [vmem:[%s7] sm:$0xff]
    %v2033 = vld [vmem:[%s7 + $0x8] sm:$0xff]
    %v2034 = vld [vmem:[%s7 + $0x10] sm:$0xff]
    %v2035 = vld [vmem:[%s7 + $0x18] sm:$0xff]
    %v2036 = vld [vmem:[%s7 + $0x20] sm:$0xff]
    %v2037 = vld [vmem:[%s7 + $0x28] sm:$0xff]
    %v2038 = vld [vmem:[%s7 + $0x30] sm:$0xff]
    %v2039 = vld [vmem:[%s7 + $0x38] sm:$0xff]
    %v2040 = vld [vmem:[%s8] sm:$0x1]
    %v2042 = vperm.slane %v2040, 0
    %v2045 = vsel %vm305, %v2031, 0
    %2047 = vmatpush.msra.mxu0 0.0
    %2048 = vmatpush.msra.mxu0 0.0
    %2049 = vmatpush.msra.mxu0 0.0
    %2050 = vmatpush.msra.mxu0 0.0
    %2051 = vmatpush.msra.mxu0 0.0
    %2052 = vmatpush.msra.mxu0 0.0
    %2053 = vmatpush.msra.mxu0 0.0
    %2054 = vmatpush.msra.mxu0 0.0
    %2055 = vmatpush.msra.mxu0 %v2039
    %2056 = vmatpush.msra.mxu0 %v2038
    %2057 = vmatpush.msra.mxu0 %v2037
    %2058 = vmatpush.msra.mxu0 %v2036
    %2059 = vmatpush.msra.mxu0 %v2035
    %2060 = vmatpush.msra.mxu0 %v2034
    %2061 = vmatpush.msra.mxu0 %v2033
    %2062 = vmatpush.msra.mxu0 %v2032
    %2063 = vmatmul.f32.gmra.mxu0 %v2045
    %v2064 = vpop.f32.mrf.mxu0
    %v2065 = vadd.f32 %v2042, %v2064
    %2066 = vdwg.mxu0
    %vm2067 = vcmask 31744
    %2068 = vst.msk [vmem:[%s9] sm:$0xff] %vm2067, %v2065
    // Predicated region
    $region46: #{lstm_block_forward.1} parent=1 // pred_check
      _
    $region47: #{lstm_block_forward.1} parent=1 // pred_check_branch
      %2070 = sbr.rel (0) target = $region49
    $region48: #{lstm_block_forward.1} parent=1 // pred_region
      _
    $region49: #{lstm_block_forward.1} parent=1 // pred_fallthru
      _
    // Predicated region
    $region50: #{lstm_block_forward.1} parent=1 // pred_check
      _
    $region51: #{lstm_block_forward.1} parent=1 // pred_check_branch
      %2072 = sbr.rel (0) target = $region53
    $region52: #{lstm_block_forward.1} parent=1 // pred_region
      _
    $region53: #{lstm_block_forward.1} parent=1 // pred_fallthru
      _
    %2073 = vsyncpa [#allocation5], 1
    %2074 = vsyncpa [#allocation7], 1

</llo_original>
